<compile_context>
chip_gen: v6e
topology: v6e:2x2x1
jax: 0.10.0
libtpu: 0.0.40
codegen_flags: <defaults>
</compile_context>

<pallas_src>
import functools

import jax
import jax.numpy as jnp
from jax import lax
from jax.experimental import pallas as pl
from jax.experimental.pallas import tpu as pltpu


_LANE = 128   # TPU lane width; C2 tiles sized to this for lane-dense vregs.
_SUB = 8      # sublane width


def _round_up(x, m):
    return ((x + m - 1) // m) * m


def _pick_th(h, wpp, p):
    """Largest row-strip height dividing h with per-strip scratch <= ~2 MiB."""
    cap_rows = max(1, (2 * 2**20) // (wpp * _LANE * 4) - 2 * p)
    best = 1
    for d in range(1, h + 1):
        if h % d == 0 and d <= cap_rows:
            best = d
    return best


# ------------------------------------------------------------------
# Fused LightConv kernel
# ------------------------------------------------------------------
def _lightconv_kernel(x_ref, w1_ref, b1_ref, wdw_ref, b2_ref, o_ref, y_ref,
                      *, k, p, w, th, tr, n_strips):
    """One grid step = one (batch, row-strip, c2-tile).

    Per-step shapes:
      x_ref  : (S, c1p)          zero-padded input strip, S = (th+2p)*wpp
      w1_ref : (c1p, 128)        1x1 weights, BN1 scale folded in
      b1_ref : (1, 128)          BN1 bias
      wdw_ref: (k*k, 128)        depthwise taps, BN2 scale folded in
      b2_ref : (1, 128)          BN2 bias
      o_ref  : (th, w, 128)      output row strip
      y_ref  : (th+2p, wpp, 128) VMEM scratch: conv1 output incl. zero halo
    """
    rows, wpp, tc2 = y_ref.shape          # rows = th + 2p, tc2 = 128

    # ---- phase 1: pointwise 1x1 conv (+ folded BN1 bias) on the MXU ---------
    y2d = jnp.dot(x_ref[...], w1_ref[...],
                  preferred_element_type=jnp.float32) + b1_ref[...]
    y_ref[...] = y2d.reshape(rows, wpp, tc2)      # wpp % 8 == 0 -> free reshape

    # ---- zero the depthwise conv's zero-padding halo -------------------------
    # (the matmul left bias1, not 0, wherever the spatially padded input was 0)
    if p:
        zc = jnp.zeros((rows, p, tc2), jnp.float32)
        y_ref[:, 0:p, :] = zc                      # left halo columns
        y_ref[:, p + w:p + w + p, :] = zc          # right halo columns
        zr = jnp.zeros((p, wpp, tc2), jnp.float32)

        @pl.when(pl.program_id(1) == 0)
        def _top():                                # top rows, first strip only
            y_ref[0:p, :, :] = zr

        @pl.when(pl.program_id(1) == n_strips - 1)
        def _bottom():                             # bottom rows, last strip only
            y_ref[th + p:rows, :, :] = zr

    # ---- phase 2: depthwise kxk conv (+ folded BN2 bias) + ReLU --------------
    taps = [wdw_ref[t, :] for t in range(k * k)]   # hoisted tiny per-tap loads
    b2v = b2_ref[0, :]

    @pl.loop(0, th // tr)
    def _chunk(r):
        r0 = pl.multiple_of(r * tr, tr)
        # First tap's multiply folded into the accumulator init (VALU trim).
        acc = y_ref[pl.ds(r0, tr), pl.ds(0, w), :] * taps[0] + b2v
        for t in range(1, k * k):
            dy, dx = divmod(t, k)
            # Shifted windows loaded straight from the scratch ref (no
            # in-register shifted copies).
            acc = acc + y_ref[pl.ds(r0 + dy, tr), pl.ds(dx, w), :] * taps[t]
        o_ref[pl.ds(r0, tr), :, :] = jnp.maximum(acc, 0.0).astype(o_ref.dtype)


# ------------------------------------------------------------------
# Wrappers
# ------------------------------------------------------------------
def light_conv_nhwc(x_nhwc, w1, b1, wdw, b2, *, k):
    """Fused LightConv on NHWC input.

    x_nhwc: (N,H,W,C1).  w1: (C1,C2) with BN1 scale folded.  b1: (C2,).
    wdw: (k*k,C2) with BN2 scale folded.  b2: (C2,).  Returns (N,H,W,C2) f32.
    """
    if k % 2 != 1:
        raise NotImplementedError("odd k only ('same' autopad); even k changes spatial size")
    n, h, w, c1 = x_nhwc.shape
    c2 = w1.shape[1]
    p = k // 2
    wp = w + 2 * p
    wpp = _round_up(wp, _SUB)              # sublane-aligned padded width

    # Lane-dense C2 tiles (pad weights/biases to 128) and 8-aligned matmul K.
    c2p = _round_up(c2, _LANE)
    c1p = _round_up(c1, _SUB)
    if c2p != c2:
        w1 = jnp.pad(w1, ((0, 0), (0, c2p - c2)))
        b1 = jnp.pad(b1, (0, c2p - c2))
        wdw = jnp.pad(wdw, ((0, 0), (0, c2p - c2)))
        b2 = jnp.pad(b2, (0, c2p - c2))
    if c1p != c1:
        w1 = jnp.pad(w1, ((0, c1p - c1), (0, 0)))

    th = _pick_th(h, wpp, p)               # row-strip height (divides h)
    ns = h // th
    rows = th + 2 * p
    S = rows * wpp
    tr = next(c for c in (_SUB, 4, 2, 1) if th % c == 0)   # phase-2 chunk rows

    # Zero-pad spatially + pad channels, then lay the per-strip row windows
    # (incl. their 2p halo rows) out contiguously: each grid step DMAs one
    # contiguous (S, c1p) block which is directly the MXU LHS.
    xp = jnp.pad(x_nhwc.astype(jnp.float32),
                 ((0, 0), (p, p), (p, p + (wpp - wp)), (0, c1p - c1)))
    xs = jnp.stack([xp[:, s * th: s * th + rows] for s in range(ns)], axis=1)
    xs = xs.reshape(n, ns, S, c1p)

    kern = functools.partial(_lightconv_kernel, k=k, p=p, w=w, th=th, tr=tr,
                             n_strips=ns)

    # VMEM budget from padded layouts (minor dims pad to 128 lanes / 8 sublanes).
    xblk = 2 * 4 * _round_up(S, _SUB) * _LANE                      # x strip (2 bufs)
    wblk = 2 * 4 * _LANE * (c1p + _round_up(k * k, _SUB) + 2 * _SUB)
    oblk = 2 * 4 * th * _round_up(w, _SUB) * _LANE                 # out strip (2 bufs)
    scr = 4 * S * _LANE                                            # conv1 scratch
    est = xblk + wblk + oblk + 2 * scr                             # + matmul temp
    vmem_limit = int(min(48 * 2**20, max(16 * 2**20, 3 * est // 2)))

    out = pl.pallas_call(
        kern,
        out_shape=jax.ShapeDtypeStruct((n, h, w, c2p), jnp.float32),
        grid_spec=pltpu.PrefetchScalarGridSpec(
            num_scalar_prefetch=0,
            # c2 innermost: the (larger) x strip block is re-used across c2
            # tiles without re-DMA; every axis is independent -> all parallel.
            grid=(n, ns, c2p // _LANE),
            in_specs=[
                pl.BlockSpec((None, None, S, c1p), lambda ni, hi, ci: (ni, hi, 0, 0)),
                pl.BlockSpec((c1p, _LANE),         lambda ni, hi, ci: (0, ci)),
                pl.BlockSpec((1, _LANE),           lambda ni, hi, ci: (0, ci)),
                pl.BlockSpec((k * k, _LANE),       lambda ni, hi, ci: (0, ci)),
                pl.BlockSpec((1, _LANE),           lambda ni, hi, ci: (0, ci)),
            ],
            out_specs=pl.BlockSpec((None, th, w, _LANE),
                                   lambda ni, hi, ci: (ni, hi, 0, ci)),
            scratch_shapes=[pltpu.VMEM((rows, wpp, _LANE), jnp.float32)],
        ),
        compiler_params=pltpu.CompilerParams(
            dimension_semantics=("parallel", "parallel", "parallel"),
            vmem_limit_bytes=vmem_limit,
        ),
    )(xs, w1, b1.reshape(1, c2p), wdw, b2.reshape(1, c2p))
    # The :c2 slice fuses with the caller's NHWC->NCHW transpose under jit
    # (one copy pass); NHWC callers with c2 % 128 == 0 pay nothing.
    return out[..., :c2]


def fold_bn(gamma, beta, mean, var, eps=1e-5):
    scale = gamma / jnp.sqrt(var + eps)
    bias = beta - mean * scale
    return scale, bias


def light_conv_forward(x_nchw, params, *, k):
    """LightConv forward, NCHW in / NCHW out (PyTorch convention).

    NHWC callers should use light_conv_nhwc directly and skip both transposes.
    """
    s1, bias1 = fold_bn(*params["bn1"])
    s2, bias2 = fold_bn(*params["bn2"])
    w1 = params["w1"] * s1[None, :]        # fold BN1 scale into the 1x1 weights
    wdw = params["w_dw"] * s2[None, :]     # fold BN2 scale into the depthwise taps
    x = jnp.transpose(x_nchw, (0, 2, 3, 1))            # NCHW -> NHWC
    y = light_conv_nhwc(x, w1, bias1, wdw, bias2, k=k)
    return jnp.transpose(y, (0, 3, 1, 2))              # NHWC -> NCHW


# ------------------------------------------------------------------
# Pure-JAX reference (for correctness check)
# ------------------------------------------------------------------
def reference_lightconv(x, params, *, k, c2):
    w1 = jnp.transpose(params["w1"], (1, 0)).reshape(c2, -1, 1, 1)     # OIHW
    wdw = jnp.transpose(params["w_dw"], (1, 0)).reshape(c2, 1, k, k)   # OIHW (groups=c2)
    s1, b1 = fold_bn(*params["bn1"])
    s2, b2 = fold_bn(*params["bn2"])
    dn = ("NCHW", "OIHW", "NCHW")
    y = lax.conv_general_dilated(x, w1, (1, 1), "VALID", dimension_numbers=dn)
    y = y * s1[None, :, None, None] + b1[None, :, None, None]
    p = k // 2
    z = lax.conv_general_dilated(y, wdw, (1, 1), [(p, p), (p, p)],
                                 feature_group_count=c2, dimension_numbers=dn)
    z = z * s2[None, :, None, None] + b2[None, :, None, None]
    return jnp.maximum(z, 0.0)


if __name__ == "__main__":
    c1, c2, k = 4, 8, 3
    n, h, w = 2, 16, 16

    key = jax.random.PRNGKey(0)
    kx, k1, k2, kg1, kb1, kg2, kb2, kv1, kv2, km1, km2 = jax.random.split(key, 11)

    x = jax.random.normal(kx, (n, c1, h, w), jnp.float32)

    params = {
        # conv1 weight: PyTorch (c2, c1, 1, 1) stored here as (c1, c2) matrix
        "w1": jax.random.normal(k1, (c1, c2), jnp.float32) * 0.3,
        # dw conv weight: PyTorch (c2, 1, k, k) stored here as (k*k, c2)
        "w_dw": jax.random.normal(k2, (k * k, c2), jnp.float32) * 0.3,
        # BN params: (gamma, beta, running_mean, running_var) — eval-mode semantics
        "bn1": (1.0 + 0.1 * jax.random.normal(kg1, (c2,)),
                0.1 * jax.random.normal(kb1, (c2,)),
                0.1 * jax.random.normal(km1, (c2,)),
                1.0 + 0.1 * jax.random.uniform(kv1, (c2,))),
        "bn2": (1.0 + 0.1 * jax.random.normal(kg2, (c2,)),
                0.1 * jax.random.normal(kb2, (c2,)),
                0.1 * jax.random.normal(km2, (c2,)),
                1.0 + 0.1 * jax.random.uniform(kv2, (c2,))),
    }

    fwd = jax.jit(functools.partial(light_conv_forward, k=k))
    out = jax.block_until_ready(fwd(x, params))
    ref = jax.block_until_ready(reference_lightconv(x, params, k=k, c2=c2))

    assert out.shape == (n, c2, h, w)
    # Tolerance allows for MXU default-precision input rounding of the folded-BN
    # 1x1 matmul vs the XLA reference conv; structural errors would be >> 1e-1.
    assert jnp.allclose(out, ref, rtol=2e-2, atol=2e-2), float(jnp.max(jnp.abs(out - ref)))

    print("KERNEL_OK")
</pallas_src>

<mosaic_0001>
module attributes {stable_mosaic.version = 11 : i64} {
  func.func @_lightconv_kernel(%arg0: i32, %arg1: i32, %arg2: i32, %arg3: memref<1x1x432x8xf32, #tpu.memory_space<vmem>>, %arg4: memref<8x128xf32, #tpu.memory_space<vmem>>, %arg5: memref<1x128xf32, #tpu.memory_space<vmem>>, %arg6: memref<9x128xf32, #tpu.memory_space<vmem>>, %arg7: memref<1x128xf32, #tpu.memory_space<vmem>>, %arg8: memref<1x16x16x128xf32, #tpu.memory_space<vmem>>, %arg9: memref<18x24x128xf32, #tpu.memory_space<vmem>>) attributes {dimension_semantics = [#tpu.dimension_semantics<parallel>, #tpu.dimension_semantics<parallel>, #tpu.dimension_semantics<parallel>], iteration_bounds = array<i64: 2, 1, 1>, scalar_prefetch = 0 : i64, scratch_operands = 1 : i64, tpu.core_type = #tpu.core_type<tc>, window_params = [{transform_indices = @transform_0, window_bounds = array<i64: 1, 1, 432, 8>}, {transform_indices = @transform_1, window_bounds = array<i64: 8, 128>}, {transform_indices = @transform_2, window_bounds = array<i64: 1, 128>}, {transform_indices = @transform_3, window_bounds = array<i64: 9, 128>}, {transform_indices = @transform_4, window_bounds = array<i64: 1, 128>}, {transform_indices = @transform_5, window_bounds = array<i64: 1, 16, 16, 128>}]} {
    %c0 = arith.constant 0 : index
    %c0_0 = arith.constant 0 : index
    %c0_1 = arith.constant 0 : index
    %c0_2 = arith.constant 0 : index
    %0 = vector.load %arg3[%c0, %c0_0, %c0_1, %c0_2] : memref<1x1x432x8xf32, #tpu.memory_space<vmem>>, vector<1x1x432x8xf32>
    %1 = vector.shape_cast %0 : vector<1x1x432x8xf32> to vector<432x8xf32>
    %c0_3 = arith.constant 0 : index
    %c0_4 = arith.constant 0 : index
    %2 = vector.load %arg4[%c0_3, %c0_4] : memref<8x128xf32, #tpu.memory_space<vmem>>, vector<8x128xf32>
    %cst = arith.constant dense<0.000000e+00> : vector<432x128xf32>
    %3 = tpu.matmul %1, %2, %cst {dimension_numbers = #tpu.dot_dimension_numbers<[1], [0], [0], [1], [0, 0, 1, 1], [], []>} : vector<432x8xf32>, vector<8x128xf32>, vector<432x128xf32> -> vector<432x128xf32>
    %c0_5 = arith.constant 0 : index
    %c0_6 = arith.constant 0 : index
    %4 = vector.load %arg5[%c0_5, %c0_6] : memref<1x128xf32, #tpu.memory_space<vmem>>, vector<1x128xf32>
    %5 = vector.broadcast %4 : vector<1x128xf32> to vector<432x128xf32>
    %6 = arith.addf %3, %5 : vector<432x128xf32>
    %7 = vector.shape_cast %6 : vector<432x128xf32> to vector<18x24x128xf32>
    %c0_7 = arith.constant 0 : index
    %c0_8 = arith.constant 0 : index
    %c0_9 = arith.constant 0 : index
    %8 = vector.load %arg9[%c0_7, %c0_8, %c0_9] : memref<18x24x128xf32, #tpu.memory_space<vmem>>, vector<18x24x128xf32>
    tpu.vector_store %arg9[%c0_7, %c0_8, %c0_9], %7 {strides = array<i32>} : memref<18x24x128xf32, #tpu.memory_space<vmem>>, vector<18x24x128xf32>,
    %cst_10 = arith.constant 0.000000e+00 : f32
    %9 = vector.broadcast %cst_10 : f32 to vector<18x1x128xf32>
    %c0_11 = arith.constant 0 : index
    %c0_12 = arith.constant 0 : index
    %c0_13 = arith.constant 0 : index
    %10 = vector.load %arg9[%c0_11, %c0_12, %c0_13] : memref<18x24x128xf32, #tpu.memory_space<vmem>>, vector<18x1x128xf32>
    tpu.vector_store %arg9[%c0_11, %c0_12, %c0_13], %9 {strides = array<i32>} : memref<18x24x128xf32, #tpu.memory_space<vmem>>, vector<18x1x128xf32>,
    %c0_14 = arith.constant 0 : index
    %c17 = arith.constant 17 : index
    %c0_15 = arith.constant 0 : index
    %11 = vector.load %arg9[%c0_14, %c17, %c0_15] : memref<18x24x128xf32, #tpu.memory_space<vmem>>, vector<18x1x128xf32>
    tpu.vector_store %arg9[%c0_14, %c17, %c0_15], %9 {strides = array<i32>} : memref<18x24x128xf32, #tpu.memory_space<vmem>>, vector<18x1x128xf32>,
    %cst_16 = arith.constant 0.000000e+00 : f32
    %12 = vector.broadcast %cst_16 : f32 to vector<1x24x128xf32>
    %c0_i32 = arith.constant 0 : i32
    %13 = arith.cmpi eq, %arg1, %c0_i32 : i32
    %14 = arith.extui %13 : i1 to i32
    %c0_i32_17 = arith.constant 0 : i32
    %15 = arith.cmpi ne, %14, %c0_i32_17 : i32
    scf.if %15 {
      %c0_34 = arith.constant 0 : index
      %c0_35 = arith.constant 0 : index
      %c0_36 = arith.constant 0 : index
      %40 = vector.load %arg9[%c0_34, %c0_35, %c0_36] : memref<18x24x128xf32, #tpu.memory_space<vmem>>, vector<1x24x128xf32>
      tpu.vector_store %arg9[%c0_34, %c0_35, %c0_36], %12 {strides = array<i32>} : memref<18x24x128xf32, #tpu.memory_space<vmem>>, vector<1x24x128xf32>,
    } else {
    }
    %c0_i32_18 = arith.constant 0 : i32
    %16 = arith.cmpi eq, %arg1, %c0_i32_18 : i32
    %17 = arith.extui %16 : i1 to i32
    %c0_i32_19 = arith.constant 0 : i32
    %18 = arith.cmpi ne, %17, %c0_i32_19 : i32
    scf.if %18 {
      %c17_34 = arith.constant 17 : index
      %c0_35 = arith.constant 0 : index
      %c0_36 = arith.constant 0 : index
      %40 = vector.load %arg9[%c17_34, %c0_35, %c0_36] : memref<18x24x128xf32, #tpu.memory_space<vmem>>, vector<1x24x128xf32>
      tpu.vector_store %arg9[%c17_34, %c0_35, %c0_36], %12 {strides = array<i32>} : memref<18x24x128xf32, #tpu.memory_space<vmem>>, vector<1x24x128xf32>,
    } else {
    }
    %c0_20 = arith.constant 0 : index
    %c0_21 = arith.constant 0 : index
    %19 = vector.load %arg6[%c0_20, %c0_21] : memref<9x128xf32, #tpu.memory_space<vmem>>, vector<1x128xf32>
    %20 = vector.shape_cast %19 : vector<1x128xf32> to vector<128xf32>
    %c1 = arith.constant 1 : index
    %c0_22 = arith.constant 0 : index
    %21 = vector.load %arg6[%c1, %c0_22] : memref<9x128xf32, #tpu.memory_space<vmem>>, vector<1x128xf32>
    %22 = vector.shape_cast %21 : vector<1x128xf32> to vector<128xf32>
    %c2 = arith.constant 2 : index
    %c0_23 = arith.constant 0 : index
    %23 = vector.load %arg6[%c2, %c0_23] : memref<9x128xf32, #tpu.memory_space<vmem>>, vector<1x128xf32>
    %24 = vector.shape_cast %23 : vector<1x128xf32> to vector<128xf32>
    %c3 = arith.constant 3 : index
    %c0_24 = arith.constant 0 : index
    %25 = vector.load %arg6[%c3, %c0_24] : memref<9x128xf32, #tpu.memory_space<vmem>>, vector<1x128xf32>
    %26 = vector.shape_cast %25 : vector<1x128xf32> to vector<128xf32>
    %c4 = arith.constant 4 : index
    %c0_25 = arith.constant 0 : index
    %27 = vector.load %arg6[%c4, %c0_25] : memref<9x128xf32, #tpu.memory_space<vmem>>, vector<1x128xf32>
    %28 = vector.shape_cast %27 : vector<1x128xf32> to vector<128xf32>
    %c5 = arith.constant 5 : index
    %c0_26 = arith.constant 0 : index
    %29 = vector.load %arg6[%c5, %c0_26] : memref<9x128xf32, #tpu.memory_space<vmem>>, vector<1x128xf32>
    %30 = vector.shape_cast %29 : vector<1x128xf32> to vector<128xf32>
    %c6 = arith.constant 6 : index
    %c0_27 = arith.constant 0 : index
    %31 = vector.load %arg6[%c6, %c0_27] : memref<9x128xf32, #tpu.memory_space<vmem>>, vector<1x128xf32>
    %32 = vector.shape_cast %31 : vector<1x128xf32> to vector<128xf32>
    %c7 = arith.constant 7 : index
    %c0_28 = arith.constant 0 : index
    %33 = vector.load %arg6[%c7, %c0_28] : memref<9x128xf32, #tpu.memory_space<vmem>>, vector<1x128xf32>
    %34 = vector.shape_cast %33 : vector<1x128xf32> to vector<128xf32>
    %c8 = arith.constant 8 : index
    %c0_29 = arith.constant 0 : index
    %35 = vector.load %arg6[%c8, %c0_29] : memref<9x128xf32, #tpu.memory_space<vmem>>, vector<1x128xf32>
    %36 = vector.shape_cast %35 : vector<1x128xf32> to vector<128xf32>
    %c0_30 = arith.constant 0 : index
    %c0_31 = arith.constant 0 : index
    %37 = vector.load %arg7[%c0_30, %c0_31] : memref<1x128xf32, #tpu.memory_space<vmem>>, vector<1x128xf32>
    %38 = vector.shape_cast %37 : vector<1x128xf32> to vector<128xf32>
    %c0_i32_32 = arith.constant 0 : i32
    %c2_i32 = arith.constant 2 : i32
    %39 = arith.addi %c0_i32_32, %c2_i32 : i32
    %c1_i32 = arith.constant 1 : i32
    scf.for %arg10 = %c0_i32_32 to %39 step %c1_i32  : i32 {
      %c1_i32_34 = arith.constant 1 : i32
      %40 = arith.muli %arg10, %c1_i32_34 : i32
      %c0_i32_35 = arith.constant 0 : i32
      %41 = arith.addi %c0_i32_35, %40 : i32
      %c8_i32 = arith.constant 8 : i32
      %42 = arith.muli %41, %c8_i32 : i32
      %43 = tpu.assume_multiple %42, 8 : i32
      %44 = arith.index_cast %43 : i32 to index
      %c0_36 = arith.constant 0 : index
      %c0_37 = arith.constant 0 : index
      %45 = vector.load %arg9[%44, %c0_36, %c0_37] : memref<18x24x128xf32, #tpu.memory_space<vmem>>, vector<8x16x128xf32>
      %46 = vector.shape_cast %20 : vector<128xf32> to vector<1x1x128xf32>
      %47 = vector.broadcast %46 : vector<1x1x128xf32> to vector<8x16x128xf32>
      %48 = arith.mulf %45, %47 : vector<8x16x128xf32>
      %49 = vector.shape_cast %38 : vector<128xf32> to vector<1x1x128xf32>
      %50 = vector.broadcast %49 : vector<1x1x128xf32> to vector<8x16x128xf32>
      %51 = arith.addf %48, %50 : vector<8x16x128xf32>
      %c0_i32_38 = arith.constant 0 : i32
      %52 = arith.addi %43, %c0_i32_38 : i32
      %53 = arith.index_cast %52 : i32 to index
      %c1_39 = arith.constant 1 : index
      %c0_40 = arith.constant 0 : index
      %54 = vector.load %arg9[%53, %c1_39, %c0_40] : memref<18x24x128xf32, #tpu.memory_space<vmem>>, vector<8x16x128xf32>
      %55 = vector.shape_cast %22 : vector<128xf32> to vector<1x1x128xf32>
      %56 = vector.broadcast %55 : vector<1x1x128xf32> to vector<8x16x128xf32>
      %57 = arith.mulf %54, %56 : vector<8x16x128xf32>
      %58 = arith.addf %51, %57 : vector<8x16x128xf32>
      %c0_i32_41 = arith.constant 0 : i32
      %59 = arith.addi %43, %c0_i32_41 : i32
      %60 = arith.index_cast %59 : i32 to index
      %c2_42 = arith.constant 2 : index
      %c0_43 = arith.constant 0 : index
      %61 = vector.load %arg9[%60, %c2_42, %c0_43] : memref<18x24x128xf32, #tpu.memory_space<vmem>>, vector<8x16x128xf32>
      %62 = vector.shape_cast %24 : vector<128xf32> to vector<1x1x128xf32>
      %63 = vector.broadcast %62 : vector<1x1x128xf32> to vector<8x16x128xf32>
      %64 = arith.mulf %61, %63 : vector<8x16x128xf32>
      %65 = arith.addf %58, %64 : vector<8x16x128xf32>
      %c1_i32_44 = arith.constant 1 : i32
      %66 = arith.addi %43, %c1_i32_44 : i32
      %67 = arith.index_cast %66 : i32 to index
      %c0_45 = arith.constant 0 : index
      %c0_46 = arith.constant 0 : index
      %68 = vector.load %arg9[%67, %c0_45, %c0_46] : memref<18x24x128xf32, #tpu.memory_space<vmem>>, vector<8x16x128xf32>
      %69 = vector.shape_cast %26 : vector<128xf32> to vector<1x1x128xf32>
      %70 = vector.broadcast %69 : vector<1x1x128xf32> to vector<8x16x128xf32>
      %71 = arith.mulf %68, %70 : vector<8x16x128xf32>
      %72 = arith.addf %65, %71 : vector<8x16x128xf32>
      %c1_i32_47 = arith.constant 1 : i32
      %73 = arith.addi %43, %c1_i32_47 : i32
      %74 = arith.index_cast %73 : i32 to index
      %c1_48 = arith.constant 1 : index
      %c0_49 = arith.constant 0 : index
      %75 = vector.load %arg9[%74, %c1_48, %c0_49] : memref<18x24x128xf32, #tpu.memory_space<vmem>>, vector<8x16x128xf32>
      %76 = vector.shape_cast %28 : vector<128xf32> to vector<1x1x128xf32>
      %77 = vector.broadcast %76 : vector<1x1x128xf32> to vector<8x16x128xf32>
      %78 = arith.mulf %75, %77 : vector<8x16x128xf32>
      %79 = arith.addf %72, %78 : vector<8x16x128xf32>
      %c1_i32_50 = arith.constant 1 : i32
      %80 = arith.addi %43, %c1_i32_50 : i32
      %81 = arith.index_cast %80 : i32 to index
      %c2_51 = arith.constant 2 : index
      %c0_52 = arith.constant 0 : index
      %82 = vector.load %arg9[%81, %c2_51, %c0_52] : memref<18x24x128xf32, #tpu.memory_space<vmem>>, vector<8x16x128xf32>
      %83 = vector.shape_cast %30 : vector<128xf32> to vector<1x1x128xf32>
      %84 = vector.broadcast %83 : vector<1x1x128xf32> to vector<8x16x128xf32>
      %85 = arith.mulf %82, %84 : vector<8x16x128xf32>
      %86 = arith.addf %79, %85 : vector<8x16x128xf32>
      %c2_i32_53 = arith.constant 2 : i32
      %87 = arith.addi %43, %c2_i32_53 : i32
      %88 = arith.index_cast %87 : i32 to index
      %c0_54 = arith.constant 0 : index
      %c0_55 = arith.constant 0 : index
      %89 = vector.load %arg9[%88, %c0_54, %c0_55] : memref<18x24x128xf32, #tpu.memory_space<vmem>>, vector<8x16x128xf32>
      %90 = vector.shape_cast %32 : vector<128xf32> to vector<1x1x128xf32>
      %91 = vector.broadcast %90 : vector<1x1x128xf32> to vector<8x16x128xf32>
      %92 = arith.mulf %89, %91 : vector<8x16x128xf32>
      %93 = arith.addf %86, %92 : vector<8x16x128xf32>
      %c2_i32_56 = arith.constant 2 : i32
      %94 = arith.addi %43, %c2_i32_56 : i32
      %95 = arith.index_cast %94 : i32 to index
      %c1_57 = arith.constant 1 : index
      %c0_58 = arith.constant 0 : index
      %96 = vector.load %arg9[%95, %c1_57, %c0_58] : memref<18x24x128xf32, #tpu.memory_space<vmem>>, vector<8x16x128xf32>
      %97 = vector.shape_cast %34 : vector<128xf32> to vector<1x1x128xf32>
      %98 = vector.broadcast %97 : vector<1x1x128xf32> to vector<8x16x128xf32>
      %99 = arith.mulf %96, %98 : vector<8x16x128xf32>
      %100 = arith.addf %93, %99 : vector<8x16x128xf32>
      %c2_i32_59 = arith.constant 2 : i32
      %101 = arith.addi %43, %c2_i32_59 : i32
      %102 = arith.index_cast %101 : i32 to index
      %c2_60 = arith.constant 2 : index
      %c0_61 = arith.constant 0 : index
      %103 = vector.load %arg9[%102, %c2_60, %c0_61] : memref<18x24x128xf32, #tpu.memory_space<vmem>>, vector<8x16x128xf32>
      %104 = vector.shape_cast %36 : vector<128xf32> to vector<1x1x128xf32>
      %105 = vector.broadcast %104 : vector<1x1x128xf32> to vector<8x16x128xf32>
      %106 = arith.mulf %103, %105 : vector<8x16x128xf32>
      %107 = arith.addf %100, %106 : vector<8x16x128xf32>
      %cst_62 = arith.constant 0.000000e+00 : f32
      %108 = vector.broadcast %cst_62 : f32 to vector<8x16x128xf32>
      %109 = arith.maximumf %107, %108 : vector<8x16x128xf32>
      %c0_63 = arith.constant 0 : index
      %110 = arith.index_cast %43 : i32 to index
      %c0_64 = arith.constant 0 : index
      %c0_65 = arith.constant 0 : index
      %111 = vector.load %arg8[%c0_63, %110, %c0_64, %c0_65] : memref<1x16x16x128xf32, #tpu.memory_space<vmem>>, vector<1x8x16x128xf32>
      %112 = vector.shape_cast %111 : vector<1x8x16x128xf32> to vector<8x16x128xf32>
      %113 = vector.shape_cast %109 : vector<8x16x128xf32> to vector<1x8x16x128xf32>
      tpu.vector_store %arg8[%c0_63, %110, %c0_64, %c0_65], %113 {strides = array<i32>} : memref<1x16x16x128xf32, #tpu.memory_space<vmem>>, vector<1x8x16x128xf32>,
    }
    %c2_i32_33 = arith.constant 2 : i32
    return
  }
  func.func @transform_0(%arg0: i32, %arg1: i32, %arg2: i32) -> (i32, i32, i32, i32) {
    %c0_i32 = arith.constant 0 : i32
    %c0_i32_0 = arith.constant 0 : i32
    %c0_i32_1 = arith.constant 0 : i32
    return %arg0, %arg1, %c0_i32, %c0_i32_0 : i32, i32, i32, i32
  }
  func.func @transform_1(%arg0: i32, %arg1: i32, %arg2: i32) -> (i32, i32) {
    %c0_i32 = arith.constant 0 : i32
    %c0_i32_0 = arith.constant 0 : i32
    return %c0_i32, %arg2 : i32, i32
  }
  func.func @transform_2(%arg0: i32, %arg1: i32, %arg2: i32) -> (i32, i32) {
    %c0_i32 = arith.constant 0 : i32
    %c0_i32_0 = arith.constant 0 : i32
    return %c0_i32, %arg2 : i32, i32
  }
  func.func @transform_3(%arg0: i32, %arg1: i32, %arg2: i32) -> (i32, i32) {
    %c0_i32 = arith.constant 0 : i32
    %c0_i32_0 = arith.constant 0 : i32
    return %c0_i32, %arg2 : i32, i32
  }
  func.func @transform_4(%arg0: i32, %arg1: i32, %arg2: i32) -> (i32, i32) {
    %c0_i32 = arith.constant 0 : i32
    %c0_i32_0 = arith.constant 0 : i32
    return %c0_i32, %arg2 : i32, i32
  }
  func.func @transform_5(%arg0: i32, %arg1: i32, %arg2: i32) -> (i32, i32, i32, i32) {
    %c0_i32 = arith.constant 0 : i32
    %c0_i32_0 = arith.constant 0 : i32
    return %arg0, %arg1, %c0_i32, %arg2 : i32, i32, i32, i32
  }
}

</mosaic_0001>

<llo_original>
// kernel: light_conv_forward.1
$region0: #{light_conv_forward.1}
  #allocation0 [shape = 'u32[]', space=smem, size = 0x4, offset = 0x4, fixed_abs, tag = 'smem constant byte address 0x4 - core index']
  #allocation1 [shape = 'u32[144,128]{1,0:T(1,128)}', space=vmem, size = 0x12000, scoped, tag = 'internal scratch']
  #allocation2 [shape = 'f32[18,24,128]{2,1,0:T(8,128)}', space=vmem, size = 0x36000, scoped, tag = 'scratch operand']
  %s0 = inlined_call_operand.vmem [shape: f32[2,1,432,8], index: 0, kind: input, shape index: {}]
  %s1 = inlined_call_operand.vmem [shape: f32[8,128], index: 1, kind: input, shape index: {}]
  %s2 = inlined_call_operand.vmem [shape: f32[1,128], index: 2, kind: input, shape index: {}]
  %s3 = inlined_call_operand.vmem [shape: f32[9,128], index: 3, kind: input, shape index: {}]
  %s4 = inlined_call_operand.vmem [shape: f32[1,128], index: 4, kind: input, shape index: {}]
  %s5 = inlined_call_operand.vmem [shape: f32[2,16,16,128], index: 5, kind: output, shape index: {}]
  %s6 = sld [smem:[#allocation0]]
  $region64: #{light_conv_forward.1} parent=0
    _
  %s8 = ssub.s32 1, %s6
  %s9 = scalar_select 0, %s8, %s6
  loop: start=0, step=1, limit=4
  $region2: #{light_conv_forward.1} parent=0 // loop_pre_header
    _
  $region3: #{light_conv_forward.1} parent=0 // loop_header
    %s11 = sphi 0, %s15
    %p12 = scmp.ge.s32.totalorder %s11, 4
    %s18 = sphi 0, %s37
    %s19 = sphi 0, %s33
    %s20 = sphi 0, %s29
    %s21 = sphi 0, %s18
    %s22 = sphi 0, %s19
    %s23 = sphi 0, %s20
    %s24 = sphi 0, %s21
    %s25 = sphi 0, %s22
    %s26 = sphi 0, %s23
    %s42 = sphi 0, %s44
    %s45 = sphi 0, %s42
    %s46 = sphi 0, %s45
    %s62 = sphi 0, %s46
    %s68 = sphi 0, %s70
    %s71 = sphi 0, %s68
    %s72 = sphi 0, %s71
    %s88 = sphi 0, %s72
    %s94 = sphi 0, %s96
    %s97 = sphi 0, %s94
    %s98 = sphi 0, %s97
    %s114 = sphi 0, %s98
    %s120 = sphi 0, %s122
    %s123 = sphi 0, %s120
    %s124 = sphi 0, %s123
    %s140 = sphi 0, %s124
    %s146 = sphi 0, %s148
    %s149 = sphi 0, %s146
    %s150 = sphi 0, %s149
    %s166 = sphi 0, %s150
    %s176 = sphi 0, %s178
    %s179 = sphi 0, %s176
    %s180 = sphi 0, %s179
    %s196 = sphi 0, %s180
  $region4: #{light_conv_forward.1} parent=0 // loop_header_branch
    %14 = sbr.rel (%p12) target = $region8
  $region5: #{light_conv_forward.1} parent=0 // loop_body
    %s16 = ssub.s32 %s11, 1
    %s17 = ssub.s32 %s11, 2
    %s27 = sadd.s32 1, %s20
    %p28 = scmp.ge.s32.totalorder %s27, 1
    %s29 = scalar_select %p28, 0, %s27
    %s30 = sadd.s32 1, %s19
    %s31 = scalar_select %p28, %s30, %s19
    %p32 = scmp.ge.s32.totalorder %s31, 1
    %s33 = scalar_select %p32, 0, %s31
    %s34 = sadd.s32 1, %s18
    %s35 = scalar_select %p32, %s34, %s18
    %p36 = scmp.ge.s32.totalorder %s35, 2
    %s37 = scalar_select %p36, 0, %s35
    %s38 = ssub.s32 %s18, %s37
    %s39 = ssub.s32 %s19, %s33
    %s40 = sor.u32 %s38, %s39
    %p41 = scmp.eq.s32.totalorder %s40, 0
    %s43 = sadd.s32 %s42, 1
    %s44 = scalar_select %p41, %s42, %s43
    %p47 = pneg %p41
    %p48 = scmp.eq.s32.totalorder %s11, 1
    %p49 = por %p47, %p48
    %p50 = scmp.ne.s32.totalorder %s42, %s45
    %p51 = scmp.eq.s32.totalorder %s11, 0
    %p52 = por %p50, %p51
    %p53 = scmp.ne.s32.totalorder %s42, %s45
    %p54 = scmp.eq.s32.totalorder %s16, 1
    %p55 = por %p53, %p54
    %p56 = scmp.ne.s32.totalorder %s45, %s46
    %p57 = scmp.eq.s32.totalorder %s16, 0
    %p58 = por %p56, %p57
    %p59 = scmp.ne.s32.totalorder %s45, %s46
    %p60 = scmp.eq.s32.totalorder %s17, 1
    %p61 = por %p59, %p60
    %p63 = scmp.ne.s32.totalorder %s46, %s62
    %p64 = scmp.eq.s32.totalorder %s17, 0
    %p65 = por %p63, %p64
    %s66 = ssub.s32 %s20, %s29
    %p67 = scmp.eq.s32.totalorder %s66, 0
    %s69 = sadd.s32 %s68, 1
    %s70 = scalar_select %p67, %s68, %s69
    %p73 = pneg %p67
    %p74 = scmp.eq.s32.totalorder %s11, 1
    %p75 = por %p73, %p74
    %p76 = scmp.ne.s32.totalorder %s68, %s71
    %p77 = scmp.eq.s32.totalorder %s11, 0
    %p78 = por %p76, %p77
    %p79 = scmp.ne.s32.totalorder %s68, %s71
    %p80 = scmp.eq.s32.totalorder %s16, 1
    %p81 = por %p79, %p80
    %p82 = scmp.ne.s32.totalorder %s71, %s72
    %p83 = scmp.eq.s32.totalorder %s16, 0
    %p84 = por %p82, %p83
    %p85 = scmp.ne.s32.totalorder %s71, %s72
    %p86 = scmp.eq.s32.totalorder %s17, 1
    %p87 = por %p85, %p86
    %p89 = scmp.ne.s32.totalorder %s72, %s88
    %p90 = scmp.eq.s32.totalorder %s17, 0
    %p91 = por %p89, %p90
    %s92 = ssub.s32 %s20, %s29
    %p93 = scmp.eq.s32.totalorder %s92, 0
    %s95 = sadd.s32 %s94, 1
    %s96 = scalar_select %p93, %s94, %s95
    %p99 = pneg %p93
    %p100 = scmp.eq.s32.totalorder %s11, 1
    %p101 = por %p99, %p100
    %p102 = scmp.ne.s32.totalorder %s94, %s97
    %p103 = scmp.eq.s32.totalorder %s11, 0
    %p104 = por %p102, %p103
    %p105 = scmp.ne.s32.totalorder %s94, %s97
    %p106 = scmp.eq.s32.totalorder %s16, 1
    %p107 = por %p105, %p106
    %p108 = scmp.ne.s32.totalorder %s97, %s98
    %p109 = scmp.eq.s32.totalorder %s16, 0
    %p110 = por %p108, %p109
    %p111 = scmp.ne.s32.totalorder %s97, %s98
    %p112 = scmp.eq.s32.totalorder %s17, 1
    %p113 = por %p111, %p112
    %p115 = scmp.ne.s32.totalorder %s98, %s114
    %p116 = scmp.eq.s32.totalorder %s17, 0
    %p117 = por %p115, %p116
    %s118 = ssub.s32 %s20, %s29
    %p119 = scmp.eq.s32.totalorder %s118, 0
    %s121 = sadd.s32 %s120, 1
    %s122 = scalar_select %p119, %s120, %s121
    %p125 = pneg %p119
    %p126 = scmp.eq.s32.totalorder %s11, 1
    %p127 = por %p125, %p126
    %p128 = scmp.ne.s32.totalorder %s120, %s123
    %p129 = scmp.eq.s32.totalorder %s11, 0
    %p130 = por %p128, %p129
    %p131 = scmp.ne.s32.totalorder %s120, %s123
    %p132 = scmp.eq.s32.totalorder %s16, 1
    %p133 = por %p131, %p132
    %p134 = scmp.ne.s32.totalorder %s123, %s124
    %p135 = scmp.eq.s32.totalorder %s16, 0
    %p136 = por %p134, %p135
    %p137 = scmp.ne.s32.totalorder %s123, %s124
    %p138 = scmp.eq.s32.totalorder %s17, 1
    %p139 = por %p137, %p138
    %p141 = scmp.ne.s32.totalorder %s124, %s140
    %p142 = scmp.eq.s32.totalorder %s17, 0
    %p143 = por %p141, %p142
    %s144 = ssub.s32 %s20, %s29
    %p145 = scmp.eq.s32.totalorder %s144, 0
    %s147 = sadd.s32 %s146, 1
    %s148 = scalar_select %p145, %s146, %s147
    %p151 = pneg %p145
    %p152 = scmp.eq.s32.totalorder %s11, 1
    %p153 = por %p151, %p152
    %p154 = scmp.ne.s32.totalorder %s146, %s149
    %p155 = scmp.eq.s32.totalorder %s11, 0
    %p156 = por %p154, %p155
    %p157 = scmp.ne.s32.totalorder %s146, %s149
    %p158 = scmp.eq.s32.totalorder %s16, 1
    %p159 = por %p157, %p158
    %p160 = scmp.ne.s32.totalorder %s149, %s150
    %p161 = scmp.eq.s32.totalorder %s16, 0
    %p162 = por %p160, %p161
    %p163 = scmp.ne.s32.totalorder %s149, %s150
    %p164 = scmp.eq.s32.totalorder %s17, 1
    %p165 = por %p163, %p164
    %p167 = scmp.ne.s32.totalorder %s150, %s166
    %p168 = scmp.eq.s32.totalorder %s17, 0
    %p169 = por %p167, %p168
    %s170 = ssub.s32 %s18, %s37
    %s171 = ssub.s32 %s19, %s33
    %s172 = sor.u32 %s170, %s171
    %s173 = ssub.s32 %s20, %s29
    %s174 = sor.u32 %s172, %s173
    %p175 = scmp.eq.s32.totalorder %s174, 0
    %s177 = sadd.s32 %s176, 1
    %s178 = scalar_select %p175, %s176, %s177
    %p181 = pneg %p175
    %p182 = scmp.eq.s32.totalorder %s11, 1
    %p183 = por %p181, %p182
    %p184 = scmp.ne.s32.totalorder %s176, %s179
    %p185 = scmp.eq.s32.totalorder %s11, 0
    %p186 = por %p184, %p185
    %p187 = scmp.ne.s32.totalorder %s176, %s179
    %p188 = scmp.eq.s32.totalorder %s16, 1
    %p189 = por %p187, %p188
    %p190 = scmp.ne.s32.totalorder %s179, %s180
    %p191 = scmp.eq.s32.totalorder %s16, 0
    %p192 = por %p190, %p191
    %p193 = scmp.ne.s32.totalorder %s179, %s180
    %p194 = scmp.eq.s32.totalorder %s17, 1
    %p195 = por %p193, %p194
    %p197 = scmp.ne.s32.totalorder %s180, %s196
    %p198 = scmp.eq.s32.totalorder %s17, 0
    %p199 = por %p197, %p198
    %p200 = scmp.le.s32.totalorder 1, %s11
    %p201 = scmp.lt.s32.totalorder %s11, 3
    %p202 = pnand %p200, %p201
    %p203 = pneg %p202
    // Predicated region
    $region9: #{light_conv_forward.1} parent=5 // pred_check
      _
    $region10: #{light_conv_forward.1} parent=5 // pred_check_branch
      %205 = sbr.rel (%p202) target = $region12
    $region11: #{light_conv_forward.1} parent=5 // pred_region
      %s206 = ssub.s32 %s11, 1
      // Predicated region
      $region13: #{light_conv_forward.1} parent=11 // pred_check
        %p207 = pneg %p84
      $region14: #{light_conv_forward.1} parent=11 // pred_check_branch
        %209 = sbr.rel (%p207) target = $region16
      $region15: #{light_conv_forward.1} parent=11 // pred_region
        %p210 = scmp.lt.s32.totalorder %s23, 0
        %s211 = scalar_select %p210, %s23, 0
        %s212 = smul.addr %s211, 8
        %s213 = scalar_lea.vmem %s1, %s212
      $region16: #{light_conv_forward.1} parent=11 // pred_fallthru
        _
      // Predicated region
      $region17: #{light_conv_forward.1} parent=11 // pred_check
        %p214 = pneg %p110
      $region18: #{light_conv_forward.1} parent=11 // pred_check_branch
        %216 = sbr.rel (%p214) target = $region20
      $region19: #{light_conv_forward.1} parent=11 // pred_region
        %p217 = scmp.lt.s32.totalorder %s23, 0
        %s218 = scalar_select %p217, %s23, 0
        %s219 = scalar_lea.vmem %s2, %s218
      $region20: #{light_conv_forward.1} parent=11 // pred_fallthru
        _
      // Predicated region
      $region21: #{light_conv_forward.1} parent=11 // pred_check
        %p220 = pneg %p136
      $region22: #{light_conv_forward.1} parent=11 // pred_check_branch
        %222 = sbr.rel (%p220) target = $region24
      $region23: #{light_conv_forward.1} parent=11 // pred_region
        %p223 = scmp.lt.s32.totalorder %s23, 0
        %s224 = scalar_select %p223, %s23, 0
        %s225 = smul.addr %s224, 8
        %s226 = scalar_lea.vmem %s3, %s225
      $region24: #{light_conv_forward.1} parent=11 // pred_fallthru
        _
      // Predicated region
      $region25: #{light_conv_forward.1} parent=11 // pred_check
        %p227 = pneg %p162
      $region26: #{light_conv_forward.1} parent=11 // pred_check_branch
        %229 = sbr.rel (%p227) target = $region28
      $region27: #{light_conv_forward.1} parent=11 // pred_region
        %p230 = scmp.lt.s32.totalorder %s23, 0
        %s231 = scalar_select %p230, %s23, 0
        %s232 = scalar_lea.vmem %s4, %s231
      $region28: #{light_conv_forward.1} parent=11 // pred_fallthru
        _
    $region12: #{light_conv_forward.1} parent=5 // pred_fallthru
      _
    %p233 = scmp.lt.s32.totalorder %s11, 2
    // Predicated region
    $region29: #{light_conv_forward.1} parent=5 // pred_check
      %p234 = pneg %p233
    $region30: #{light_conv_forward.1} parent=5 // pred_check_branch
      %236 = sbr.rel (%p234) target = $region32
    $region31: #{light_conv_forward.1} parent=5 // pred_region
      // Predicated region
      $region33: #{light_conv_forward.1} parent=31 // pred_check
        %p237 = pneg %p52
      $region34: #{light_conv_forward.1} parent=31 // pred_check_branch
        %239 = sbr.rel (%p237) target = $region36
      $region35: #{light_conv_forward.1} parent=31 // pred_region
        %p240 = scmp.lt.s32.totalorder %s18, 1
        %s241 = scalar_select %p240, %s18, 1
        %p242 = scmp.lt.s32.totalorder %s19, 0
        %s243 = scalar_select %p242, %s19, 0
        %s244 = smul.addr %s243, 54
        %s245 = smul.addr %s241, 54
        %s246 = sadd.s32 %s244, %s245
        %s247 = smul.addr %s246, 8
        %s248 = scalar_lea.vmem %s0, %s247
      $region36: #{light_conv_forward.1} parent=31 // pred_fallthru
        _
    $region32: #{light_conv_forward.1} parent=5 // pred_fallthru
      _
    %p249 = scmp.le.s32.totalorder 1, %s11
    %p250 = scmp.lt.s32.totalorder %s11, 3
    %p251 = pnand %p249, %p250
    %p252 = pneg %p251
    // Predicated region
    $region37: #{light_conv_forward.1} parent=5 // pred_check
      _
    $region38: #{light_conv_forward.1} parent=5 // pred_check_branch
      %254 = sbr.rel (%p251) target = $region40
    $region39: #{light_conv_forward.1} parent=5 // pred_region
      %s255 = ssub.s32 %s11, 1
      %p256 = scmp.lt.s32.totalorder %s21, 1
      %s257 = scalar_select %p256, %s21, 1
      %p258 = scmp.lt.s32.totalorder %s22, 0
      %s259 = scalar_select %p258, %s22, 0
      %s260 = smul.addr %s259, 54
      %s261 = smul.addr %s257, 54
      %s262 = sadd.s32 %s260, %s261
      %s263 = smul.addr %s262, 8
      %s264 = scalar_lea.vmem %s0, %s263
      %p265 = pneg %p58
      %p266 = pneg %p55
      %p267 = scmp.lt.s32.totalorder %s23, 0
      %s268 = scalar_select %p267, %s23, 0
      %s269 = smul.addr %s268, 8
      %s270 = scalar_lea.vmem %s1, %s269
      %p271 = pneg %p84
      %p272 = pneg %p81
      %p273 = scmp.lt.s32.totalorder %s23, 0
      %s274 = scalar_select %p273, %s23, 0
      %s275 = scalar_lea.vmem %s2, %s274
      %p276 = pneg %p110
      %p277 = pneg %p107
      %p278 = scmp.lt.s32.totalorder %s23, 0
      %s279 = scalar_select %p278, %s23, 0
      %s280 = smul.addr %s279, 8
      %s281 = scalar_lea.vmem %s3, %s280
      %p282 = pneg %p136
      %p283 = pneg %p133
      %p284 = scmp.lt.s32.totalorder %s23, 0
      %s285 = scalar_select %p284, %s23, 0
      %s286 = scalar_lea.vmem %s4, %s285
      %p287 = pneg %p162
      %p288 = pneg %p159
      %p289 = pneg %p192
      %p290 = pneg %p189
      %s291 = smul.u32 16, %s22
      %p292 = scmp.lt.s32.totalorder %s21, 1
      %s293 = scalar_select %p292, %s21, 1
      %p294 = scmp.lt.s32.totalorder %s291, 15
      %s295 = scalar_select %p294, %s291, 15
      %p296 = scmp.lt.s32.totalorder %s23, 0
      %s297 = scalar_select %p296, %s23, 0
      %s298 = smul.addr %s295, 2
      %s299 = sadd.s32 %s297, %s298
      %s300 = smul.addr %s293, 32
      %s301 = sadd.s32 %s299, %s300
      %s302 = smul.addr %s301, 8
      %s303 = scalar_lea.vmem %s5, %s302
      %p304 = scmp.lt.s32.totalorder %s21, 1
      %s305 = scalar_select %p304, %s21, 1
      %p306 = scmp.lt.s32.totalorder %s22, 0
      %s307 = scalar_select %p306, %s22, 0
      %s308 = smul.addr %s307, 54
      %s309 = smul.addr %s305, 54
      %s310 = sadd.s32 %s308, %s309
      %s311 = smul.addr %s310, 8
      %s312 = scalar_lea.vmem %s0, %s311
      %p313 = scmp.lt.s32.totalorder %s23, 0
      %s314 = scalar_select %p313, %s23, 0
      %s315 = smul.addr %s314, 8
      %s316 = scalar_lea.vmem %s1, %s315
      %p317 = scmp.lt.s32.totalorder %s23, 0
      %s318 = scalar_select %p317, %s23, 0
      %s319 = scalar_lea.vmem %s2, %s318
      %p320 = scmp.lt.s32.totalorder %s23, 0
      %s321 = scalar_select %p320, %s23, 0
      %s322 = smul.addr %s321, 8
      %s323 = scalar_lea.vmem %s3, %s322
      %p324 = scmp.lt.s32.totalorder %s23, 0
      %s325 = scalar_select %p324, %s23, 0
      %s326 = scalar_lea.vmem %s4, %s325
      %s327 = smul.u32 16, %s22
      %p328 = scmp.lt.s32.totalorder %s21, 1
      %s329 = scalar_select %p328, %s21, 1
      %p330 = scmp.lt.s32.totalorder %s327, 15
      %s331 = scalar_select %p330, %s327, 15
      %p332 = scmp.lt.s32.totalorder %s23, 0
      %s333 = scalar_select %p332, %s23, 0
      %s334 = smul.addr %s331, 2
      %s335 = sadd.s32 %s333, %s334
      %s336 = smul.addr %s329, 32
      %s337 = sadd.s32 %s335, %s336
      %s338 = smul.addr %s337, 8
      %s339 = scalar_lea.vmem %s5, %s338
      %s340 = smul.u32 16, %s22
      %v341 = vld [vmem:[%s312] sm:$0xff]
      %v342 = vld [vmem:[%s312 + $0x8] sm:$0xff]
      %v343 = vld [vmem:[%s312 + $0x10] sm:$0xff]
      %v344 = vld [vmem:[%s312 + $0x18] sm:$0xff]
      %v345 = vld [vmem:[%s312 + $0x20] sm:$0xff]
      %v346 = vld [vmem:[%s312 + $0x28] sm:$0xff]
      %v347 = vld [vmem:[%s312 + $0x30] sm:$0xff]
      %v348 = vld [vmem:[%s312 + $0x38] sm:$0xff]
      %v349 = vld [vmem:[%s312 + $0x40] sm:$0xff]
      %v350 = vld [vmem:[%s312 + $0x48] sm:$0xff]
      %v351 = vld [vmem:[%s312 + $0x50] sm:$0xff]
      %v352 = vld [vmem:[%s312 + $0x58] sm:$0xff]
      %v353 = vld [vmem:[%s312 + $0x60] sm:$0xff]
      %v354 = vld [vmem:[%s312 + $0x68] sm:$0xff]
      %v355 = vld [vmem:[%s312 + $0x70] sm:$0xff]
      %v356 = vld [vmem:[%s312 + $0x78] sm:$0xff]
      %v357 = vld [vmem:[%s312 + $0x80] sm:$0xff]
      %v358 = vld [vmem:[%s312 + $0x88] sm:$0xff]
      %v359 = vld [vmem:[%s312 + $0x90] sm:$0xff]
      %v360 = vld [vmem:[%s312 + $0x98] sm:$0xff]
      %v361 = vld [vmem:[%s312 + $0xa0] sm:$0xff]
      %v362 = vld [vmem:[%s312 + $0xa8] sm:$0xff]
      %v363 = vld [vmem:[%s312 + $0xb0] sm:$0xff]
      %v364 = vld [vmem:[%s312 + $0xb8] sm:$0xff]
      %v365 = vld [vmem:[%s312 + $0xc0] sm:$0xff]
      %v366 = vld [vmem:[%s312 + $0xc8] sm:$0xff]
      %v367 = vld [vmem:[%s312 + $0xd0] sm:$0xff]
      %v368 = vld [vmem:[%s312 + $0xd8] sm:$0xff]
      %v369 = vld [vmem:[%s312 + $0xe0] sm:$0xff]
      %v370 = vld [vmem:[%s312 + $0xe8] sm:$0xff]
      %v371 = vld [vmem:[%s312 + $0xf0] sm:$0xff]
      %v372 = vld [vmem:[%s312 + $0xf8] sm:$0xff]
      %v373 = vld [vmem:[%s312 + $0x100] sm:$0xff]
      %v374 = vld [vmem:[%s312 + $0x108] sm:$0xff]
      %v375 = vld [vmem:[%s312 + $0x110] sm:$0xff]
      %v376 = vld [vmem:[%s312 + $0x118] sm:$0xff]
      %v377 = vld [vmem:[%s312 + $0x120] sm:$0xff]
      %v378 = vld [vmem:[%s312 + $0x128] sm:$0xff]
      %v379 = vld [vmem:[%s312 + $0x130] sm:$0xff]
      %v380 = vld [vmem:[%s312 + $0x138] sm:$0xff]
      %v381 = vld [vmem:[%s312 + $0x140] sm:$0xff]
      %v382 = vld [vmem:[%s312 + $0x148] sm:$0xff]
      %v383 = vld [vmem:[%s312 + $0x150] sm:$0xff]
      %v384 = vld [vmem:[%s312 + $0x158] sm:$0xff]
      %v385 = vld [vmem:[%s312 + $0x160] sm:$0xff]
      %v386 = vld [vmem:[%s312 + $0x168] sm:$0xff]
      %v387 = vld [vmem:[%s312 + $0x170] sm:$0xff]
      %v388 = vld [vmem:[%s312 + $0x178] sm:$0xff]
      %v389 = vld [vmem:[%s312 + $0x180] sm:$0xff]
      %v390 = vld [vmem:[%s312 + $0x188] sm:$0xff]
      %v391 = vld [vmem:[%s312 + $0x190] sm:$0xff]
      %v392 = vld [vmem:[%s312 + $0x198] sm:$0xff]
      %v393 = vld [vmem:[%s312 + $0x1a0] sm:$0xff]
      %v394 = vld [vmem:[%s312 + $0x1a8] sm:$0xff]
      %v395 = vld [vmem:[%s316] sm:$0xff]
      %v396 = vld [vmem:[%s319] sm:$0x1]
      %v398 = vlaneseq
      %v399 = vshrl.u32 %v398, 7
      %v400 = vsub.s32 0, %v399
      %v401 = vrot.slane %v396, %v400
      %vm403 = vcmask 64512
      %v405 = vsel %vm403, %v341, 0
      %v408 = vsel %vm403, %v342, 0
      %v411 = vsel %vm403, %v343, 0
      %v414 = vsel %vm403, %v344, 0
      %v417 = vsel %vm403, %v345, 0
      %v420 = vsel %vm403, %v346, 0
      %v423 = vsel %vm403, %v347, 0
      %v426 = vsel %vm403, %v348, 0
      %v429 = vsel %vm403, %v349, 0
      %v432 = vsel %vm403, %v350, 0
      %v435 = vsel %vm403, %v351, 0
      %v438 = vsel %vm403, %v352, 0
      %v441 = vsel %vm403, %v353, 0
      %v444 = vsel %vm403, %v354, 0
      %v447 = vsel %vm403, %v355, 0
      %v450 = vsel %vm403, %v356, 0
      %v453 = vsel %vm403, %v357, 0
      %v456 = vsel %vm403, %v358, 0
      %v459 = vsel %vm403, %v359, 0
      %v462 = vsel %vm403, %v360, 0
      %v465 = vsel %vm403, %v361, 0
      %v468 = vsel %vm403, %v362, 0
      %v471 = vsel %vm403, %v363, 0
      %v474 = vsel %vm403, %v364, 0
      %v477 = vsel %vm403, %v365, 0
      %v480 = vsel %vm403, %v366, 0
      %v483 = vsel %vm403, %v367, 0
      %v486 = vsel %vm403, %v368, 0
      %v489 = vsel %vm403, %v369, 0
      %v492 = vsel %vm403, %v370, 0
      %v495 = vsel %vm403, %v371, 0
      %v498 = vsel %vm403, %v372, 0
      %v501 = vsel %vm403, %v373, 0
      %v504 = vsel %vm403, %v374, 0
      %v507 = vsel %vm403, %v375, 0
      %v510 = vsel %vm403, %v376, 0
      %v513 = vsel %vm403, %v377, 0
      %v516 = vsel %vm403, %v378, 0
      %v519 = vsel %vm403, %v379, 0
      %v522 = vsel %vm403, %v380, 0
      %v525 = vsel %vm403, %v381, 0
      %v528 = vsel %vm403, %v382, 0
      %v531 = vsel %vm403, %v383, 0
      %v534 = vsel %vm403, %v384, 0
      %v537 = vsel %vm403, %v385, 0
      %v540 = vsel %vm403, %v386, 0
      %v543 = vsel %vm403, %v387, 0
      %v546 = vsel %vm403, %v388, 0
      %v549 = vsel %vm403, %v389, 0
      %v552 = vsel %vm403, %v390, 0
      %v555 = vsel %vm403, %v391, 0
      %v558 = vsel %vm403, %v392, 0
      %v561 = vsel %vm403, %v393, 0
      %v564 = vsel %vm403, %v394, 0
      %566 = vmatprep.subr.mxu0 0.0
      %567 = vmatpush1.msra.mxu0 0.0
      %568 = vmatprep.subr.mxu0 0.0
      %569 = vmatpush1.msra.mxu0 0.0
      %570 = vmatprep.subr.mxu0 0.0
      %571 = vmatpush1.msra.mxu0 0.0
      %572 = vmatprep.subr.mxu0 0.0
      %573 = vmatpush1.msra.mxu0 0.0
      %574 = vmatprep.subr.mxu0 0.0
      %575 = vmatpush1.msra.mxu0 0.0
      %576 = vmatprep.subr.mxu0 0.0
      %577 = vmatpush1.msra.mxu0 0.0
      %578 = vmatprep.subr.mxu0 0.0
      %579 = vmatpush1.msra.mxu0 0.0
      %580 = vmatprep.subr.mxu0 0.0
      %581 = vmatpush1.msra.mxu0 0.0
      %582 = vmatprep.subr.mxu0 0.0
      %583 = vmatpush1.msra.mxu0 0.0
      %584 = vmatprep.subr.mxu0 0.0
      %585 = vmatpush1.msra.mxu0 0.0
      %586 = vmatprep.subr.mxu0 0.0
      %587 = vmatpush1.msra.mxu0 0.0
      %588 = vmatprep.subr.mxu0 0.0
      %589 = vmatpush1.msra.mxu0 0.0
      %590 = vmatprep.subr.mxu0 0.0
      %591 = vmatpush1.msra.mxu0 0.0
      %592 = vmatprep.subr.mxu0 0.0
      %593 = vmatpush1.msra.mxu0 0.0
      %594 = vmatprep.subr.mxu0 0.0
      %595 = vmatpush1.msra.mxu0 0.0
      %596 = vmatprep.subr.mxu0 0.0
      %597 = vmatpush1.msra.mxu0 %v395
      %598 = vmatprep.subr.mxu0 0.0
      %599 = vmatpush2.msra.mxu0 0.0
      %600 = vmatprep.subr.mxu0 0.0
      %601 = vmatpush2.msra.mxu0 0.0
      %602 = vmatprep.subr.mxu0 0.0
      %603 = vmatpush2.msra.mxu0 0.0
      %604 = vmatprep.subr.mxu0 0.0
      %605 = vmatpush2.msra.mxu0 0.0
      %606 = vmatprep.subr.mxu0 0.0
      %607 = vmatpush2.msra.mxu0 0.0
      %608 = vmatprep.subr.mxu0 0.0
      %609 = vmatpush2.msra.mxu0 0.0
      %610 = vmatprep.subr.mxu0 0.0
      %611 = vmatpush2.msra.mxu0 0.0
      %612 = vmatprep.subr.mxu0 0.0
      %613 = vmatpush2.msra.mxu0 0.0
      %614 = vmatprep.subr.mxu0 0.0
      %615 = vmatpush2.msra.mxu0 0.0
      %616 = vmatprep.subr.mxu0 0.0
      %617 = vmatpush2.msra.mxu0 0.0
      %618 = vmatprep.subr.mxu0 0.0
      %619 = vmatpush2.msra.mxu0 0.0
      %620 = vmatprep.subr.mxu0 0.0
      %621 = vmatpush2.msra.mxu0 0.0
      %622 = vmatprep.subr.mxu0 0.0
      %623 = vmatpush2.msra.mxu0 0.0
      %624 = vmatprep.subr.mxu0 0.0
      %625 = vmatpush2.msra.mxu0 0.0
      %626 = vmatprep.subr.mxu0 0.0
      %627 = vmatpush2.msra.mxu0 0.0
      %628 = vmatprep.subr.mxu0 0.0
      %629 = vmatpush2.msra.mxu0 0.0
      %630 = vmatprep.mubr.f32.mxu0 0.0
      %631 = vmatmul.mubr.f32.gmra.mxu0 %v405
      %v632 = vpop.f32.mrf.mxu0
      %v633 = vadd.f32 %v401, %v632
      %v634 = vpop.f32.mrf.mxu0
      %635 = vmatprep.mubr.f32.mxu0 0.0
      %636 = vmatmul.mubr.f32.gmra.mxu0 %v408
      %v637 = vpop.f32.mrf.mxu0
      %v638 = vadd.f32 %v401, %v637
      %v639 = vpop.f32.mrf.mxu0
      %640 = vmatprep.mubr.f32.mxu0 0.0
      %641 = vmatmul.mubr.f32.gmra.mxu0 %v411
      %v642 = vpop.f32.mrf.mxu0
      %v643 = vadd.f32 %v401, %v642
      %v644 = vpop.f32.mrf.mxu0
      %645 = vmatprep.mubr.f32.mxu0 0.0
      %646 = vmatmul.mubr.f32.gmra.mxu0 %v414
      %v647 = vpop.f32.mrf.mxu0
      %v648 = vadd.f32 %v401, %v647
      %v649 = vpop.f32.mrf.mxu0
      %650 = vmatprep.mubr.f32.mxu0 0.0
      %651 = vmatmul.mubr.f32.gmra.mxu0 %v417
      %v652 = vpop.f32.mrf.mxu0
      %v653 = vadd.f32 %v401, %v652
      %v654 = vpop.f32.mrf.mxu0
      %655 = vmatprep.mubr.f32.mxu0 0.0
      %656 = vmatmul.mubr.f32.gmra.mxu0 %v420
      %v657 = vpop.f32.mrf.mxu0
      %v658 = vadd.f32 %v401, %v657
      %v659 = vpop.f32.mrf.mxu0
      %660 = vmatprep.mubr.f32.mxu0 0.0
      %661 = vmatmul.mubr.f32.gmra.mxu0 %v423
      %v662 = vpop.f32.mrf.mxu0
      %v663 = vadd.f32 %v401, %v662
      %v664 = vpop.f32.mrf.mxu0
      %665 = vmatprep.mubr.f32.mxu0 0.0
      %666 = vmatmul.mubr.f32.gmra.mxu0 %v426
      %v667 = vpop.f32.mrf.mxu0
      %v668 = vadd.f32 %v401, %v667
      %v669 = vpop.f32.mrf.mxu0
      %670 = vmatprep.mubr.f32.mxu0 0.0
      %671 = vmatmul.mubr.f32.gmra.mxu0 %v429
      %v672 = vpop.f32.mrf.mxu0
      %v673 = vadd.f32 %v401, %v672
      %v674 = vpop.f32.mrf.mxu0
      %675 = vmatprep.mubr.f32.mxu0 0.0
      %676 = vmatmul.mubr.f32.gmra.mxu0 %v432
      %v677 = vpop.f32.mrf.mxu0
      %v678 = vadd.f32 %v401, %v677
      %v679 = vpop.f32.mrf.mxu0
      %680 = vmatprep.mubr.f32.mxu0 0.0
      %681 = vmatmul.mubr.f32.gmra.mxu0 %v435
      %v682 = vpop.f32.mrf.mxu0
      %v683 = vadd.f32 %v401, %v682
      %v684 = vpop.f32.mrf.mxu0
      %685 = vmatprep.mubr.f32.mxu0 0.0
      %686 = vmatmul.mubr.f32.gmra.mxu0 %v438
      %v687 = vpop.f32.mrf.mxu0
      %v688 = vadd.f32 %v401, %v687
      %v689 = vpop.f32.mrf.mxu0
      %690 = vmatprep.mubr.f32.mxu0 0.0
      %691 = vmatmul.mubr.f32.gmra.mxu0 %v441
      %v692 = vpop.f32.mrf.mxu0
      %v693 = vadd.f32 %v401, %v692
      %v694 = vpop.f32.mrf.mxu0
      %695 = vmatprep.mubr.f32.mxu0 0.0
      %696 = vmatmul.mubr.f32.gmra.mxu0 %v444
      %v697 = vpop.f32.mrf.mxu0
      %v698 = vadd.f32 %v401, %v697
      %v699 = vpop.f32.mrf.mxu0
      %700 = vmatprep.mubr.f32.mxu0 0.0
      %701 = vmatmul.mubr.f32.gmra.mxu0 %v447
      %v702 = vpop.f32.mrf.mxu0
      %v703 = vadd.f32 %v401, %v702
      %v704 = vpop.f32.mrf.mxu0
      %705 = vmatprep.mubr.f32.mxu0 0.0
      %706 = vmatmul.mubr.f32.gmra.mxu0 %v450
      %v707 = vpop.f32.mrf.mxu0
      %v708 = vadd.f32 %v401, %v707
      %v709 = vpop.f32.mrf.mxu0
      %710 = vmatprep.mubr.f32.mxu0 0.0
      %711 = vmatmul.mubr.f32.gmra.mxu0 %v453
      %v712 = vpop.f32.mrf.mxu0
      %v713 = vadd.f32 %v401, %v712
      %v714 = vpop.f32.mrf.mxu0
      %715 = vmatprep.mubr.f32.mxu0 0.0
      %716 = vmatmul.mubr.f32.gmra.mxu0 %v456
      %v717 = vpop.f32.mrf.mxu0
      %v718 = vadd.f32 %v401, %v717
      %v719 = vpop.f32.mrf.mxu0
      %720 = vmatprep.mubr.f32.mxu0 0.0
      %721 = vmatmul.mubr.f32.gmra.mxu0 %v459
      %v722 = vpop.f32.mrf.mxu0
      %v723 = vadd.f32 %v401, %v722
      %v724 = vpop.f32.mrf.mxu0
      %725 = vmatprep.mubr.f32.mxu0 0.0
      %726 = vmatmul.mubr.f32.gmra.mxu0 %v462
      %v727 = vpop.f32.mrf.mxu0
      %v728 = vadd.f32 %v401, %v727
      %v729 = vpop.f32.mrf.mxu0
      %730 = vmatprep.mubr.f32.mxu0 0.0
      %731 = vmatmul.mubr.f32.gmra.mxu0 %v465
      %v732 = vpop.f32.mrf.mxu0
      %v733 = vadd.f32 %v401, %v732
      %v734 = vpop.f32.mrf.mxu0
      %735 = vmatprep.mubr.f32.mxu0 0.0
      %736 = vmatmul.mubr.f32.gmra.mxu0 %v468
      %v737 = vpop.f32.mrf.mxu0
      %v738 = vadd.f32 %v401, %v737
      %v739 = vpop.f32.mrf.mxu0
      %740 = vmatprep.mubr.f32.mxu0 0.0
      %741 = vmatmul.mubr.f32.gmra.mxu0 %v471
      %v742 = vpop.f32.mrf.mxu0
      %v743 = vadd.f32 %v401, %v742
      %v744 = vpop.f32.mrf.mxu0
      %745 = vmatprep.mubr.f32.mxu0 0.0
      %746 = vmatmul.mubr.f32.gmra.mxu0 %v474
      %v747 = vpop.f32.mrf.mxu0
      %v748 = vadd.f32 %v401, %v747
      %v749 = vpop.f32.mrf.mxu0
      %750 = vmatprep.mubr.f32.mxu0 0.0
      %751 = vmatmul.mubr.f32.gmra.mxu0 %v477
      %v752 = vpop.f32.mrf.mxu0
      %v753 = vadd.f32 %v401, %v752
      %v754 = vpop.f32.mrf.mxu0
      %755 = vmatprep.mubr.f32.mxu0 0.0
      %756 = vmatmul.mubr.f32.gmra.mxu0 %v480
      %v757 = vpop.f32.mrf.mxu0
      %v758 = vadd.f32 %v401, %v757
      %v759 = vpop.f32.mrf.mxu0
      %760 = vmatprep.mubr.f32.mxu0 0.0
      %761 = vmatmul.mubr.f32.gmra.mxu0 %v483
      %v762 = vpop.f32.mrf.mxu0
      %v763 = vadd.f32 %v401, %v762
      %v764 = vpop.f32.mrf.mxu0
      %765 = vmatprep.mubr.f32.mxu0 0.0
      %766 = vmatmul.mubr.f32.gmra.mxu0 %v486
      %v767 = vpop.f32.mrf.mxu0
      %v768 = vadd.f32 %v401, %v767
      %v769 = vpop.f32.mrf.mxu0
      %770 = vmatprep.mubr.f32.mxu0 0.0
      %771 = vmatmul.mubr.f32.gmra.mxu0 %v489
      %v772 = vpop.f32.mrf.mxu0
      %v773 = vadd.f32 %v401, %v772
      %v774 = vpop.f32.mrf.mxu0
      %775 = vmatprep.mubr.f32.mxu0 0.0
      %776 = vmatmul.mubr.f32.gmra.mxu0 %v492
      %v777 = vpop.f32.mrf.mxu0
      %v778 = vadd.f32 %v401, %v777
      %v779 = vpop.f32.mrf.mxu0
      %780 = vmatprep.mubr.f32.mxu0 0.0
      %781 = vmatmul.mubr.f32.gmra.mxu0 %v495
      %v782 = vpop.f32.mrf.mxu0
      %v783 = vadd.f32 %v401, %v782
      %v784 = vpop.f32.mrf.mxu0
      %785 = vmatprep.mubr.f32.mxu0 0.0
      %786 = vmatmul.mubr.f32.gmra.mxu0 %v498
      %v787 = vpop.f32.mrf.mxu0
      %v788 = vadd.f32 %v401, %v787
      %v789 = vpop.f32.mrf.mxu0
      %790 = vmatprep.mubr.f32.mxu0 0.0
      %791 = vmatmul.mubr.f32.gmra.mxu0 %v501
      %v792 = vpop.f32.mrf.mxu0
      %v793 = vadd.f32 %v401, %v792
      %v794 = vpop.f32.mrf.mxu0
      %795 = vmatprep.mubr.f32.mxu0 0.0
      %796 = vmatmul.mubr.f32.gmra.mxu0 %v504
      %v797 = vpop.f32.mrf.mxu0
      %v798 = vadd.f32 %v401, %v797
      %v799 = vpop.f32.mrf.mxu0
      %800 = vmatprep.mubr.f32.mxu0 0.0
      %801 = vmatmul.mubr.f32.gmra.mxu0 %v507
      %v802 = vpop.f32.mrf.mxu0
      %v803 = vadd.f32 %v401, %v802
      %v804 = vpop.f32.mrf.mxu0
      %805 = vmatprep.mubr.f32.mxu0 0.0
      %806 = vmatmul.mubr.f32.gmra.mxu0 %v510
      %v807 = vpop.f32.mrf.mxu0
      %v808 = vadd.f32 %v401, %v807
      %v809 = vpop.f32.mrf.mxu0
      %810 = vmatprep.mubr.f32.mxu0 0.0
      %811 = vmatmul.mubr.f32.gmra.mxu0 %v513
      %v812 = vpop.f32.mrf.mxu0
      %v813 = vadd.f32 %v401, %v812
      %v814 = vpop.f32.mrf.mxu0
      %815 = vmatprep.mubr.f32.mxu0 0.0
      %816 = vmatmul.mubr.f32.gmra.mxu0 %v516
      %v817 = vpop.f32.mrf.mxu0
      %v818 = vadd.f32 %v401, %v817
      %v819 = vpop.f32.mrf.mxu0
      %820 = vmatprep.mubr.f32.mxu0 0.0
      %821 = vmatmul.mubr.f32.gmra.mxu0 %v519
      %v822 = vpop.f32.mrf.mxu0
      %v823 = vadd.f32 %v401, %v822
      %v824 = vpop.f32.mrf.mxu0
      %825 = vmatprep.mubr.f32.mxu0 0.0
      %826 = vmatmul.mubr.f32.gmra.mxu0 %v522
      %v827 = vpop.f32.mrf.mxu0
      %v828 = vadd.f32 %v401, %v827
      %v829 = vpop.f32.mrf.mxu0
      %830 = vmatprep.mubr.f32.mxu0 0.0
      %831 = vmatmul.mubr.f32.gmra.mxu0 %v525
      %v832 = vpop.f32.mrf.mxu0
      %v833 = vadd.f32 %v401, %v832
      %v834 = vpop.f32.mrf.mxu0
      %835 = vmatprep.mubr.f32.mxu0 0.0
      %836 = vmatmul.mubr.f32.gmra.mxu0 %v528
      %v837 = vpop.f32.mrf.mxu0
      %v838 = vadd.f32 %v401, %v837
      %v839 = vpop.f32.mrf.mxu0
      %840 = vmatprep.mubr.f32.mxu0 0.0
      %841 = vmatmul.mubr.f32.gmra.mxu0 %v531
      %v842 = vpop.f32.mrf.mxu0
      %v843 = vadd.f32 %v401, %v842
      %v844 = vpop.f32.mrf.mxu0
      %845 = vmatprep.mubr.f32.mxu0 0.0
      %846 = vmatmul.mubr.f32.gmra.mxu0 %v534
      %v847 = vpop.f32.mrf.mxu0
      %v848 = vadd.f32 %v401, %v847
      %v849 = vpop.f32.mrf.mxu0
      %850 = vmatprep.mubr.f32.mxu0 0.0
      %851 = vmatmul.mubr.f32.gmra.mxu0 %v537
      %v852 = vpop.f32.mrf.mxu0
      %v853 = vadd.f32 %v401, %v852
      %v854 = vpop.f32.mrf.mxu0
      %855 = vmatprep.mubr.f32.mxu0 0.0
      %856 = vmatmul.mubr.f32.gmra.mxu0 %v540
      %v857 = vpop.f32.mrf.mxu0
      %v858 = vadd.f32 %v401, %v857
      %v859 = vpop.f32.mrf.mxu0
      %860 = vmatprep.mubr.f32.mxu0 0.0
      %861 = vmatmul.mubr.f32.gmra.mxu0 %v543
      %v862 = vpop.f32.mrf.mxu0
      %v863 = vadd.f32 %v401, %v862
      %v864 = vpop.f32.mrf.mxu0
      %865 = vmatprep.mubr.f32.mxu0 0.0
      %866 = vmatmul.mubr.f32.gmra.mxu0 %v546
      %v867 = vpop.f32.mrf.mxu0
      %v868 = vadd.f32 %v401, %v867
      %v869 = vpop.f32.mrf.mxu0
      %870 = vmatprep.mubr.f32.mxu0 0.0
      %871 = vmatmul.mubr.f32.gmra.mxu0 %v549
      %v872 = vpop.f32.mrf.mxu0
      %v873 = vadd.f32 %v401, %v872
      %v874 = vpop.f32.mrf.mxu0
      %875 = vmatprep.mubr.f32.mxu0 0.0
      %876 = vmatmul.mubr.f32.gmra.mxu0 %v552
      %v877 = vpop.f32.mrf.mxu0
      %v878 = vadd.f32 %v401, %v877
      %v879 = vpop.f32.mrf.mxu0
      %880 = vmatprep.mubr.f32.mxu0 0.0
      %881 = vmatmul.mubr.f32.gmra.mxu0 %v555
      %v882 = vpop.f32.mrf.mxu0
      %v883 = vadd.f32 %v401, %v882
      %v884 = vpop.f32.mrf.mxu0
      %885 = vmatprep.mubr.f32.mxu0 0.0
      %886 = vmatmul.mubr.f32.gmra.mxu0 %v558
      %v887 = vpop.f32.mrf.mxu0
      %v888 = vadd.f32 %v401, %v887
      %v889 = vpop.f32.mrf.mxu0
      %890 = vmatprep.mubr.f32.mxu0 0.0
      %891 = vmatmul.mubr.f32.gmra.mxu0 %v561
      %v892 = vpop.f32.mrf.mxu0
      %v893 = vadd.f32 %v401, %v892
      %v894 = vpop.f32.mrf.mxu0
      %895 = vmatprep.mubr.f32.mxu0 0.0
      %896 = vmatmul.mubr.f32.gmra.mxu0 %v564
      %v897 = vpop.f32.mrf.mxu0
      %v898 = vadd.f32 %v401, %v897
      %v899 = vpop.f32.mrf.mxu0
      %900 = vdwg.mxu0
      %901 = vst [vmem:[#allocation2] sm:$0xff] %v633
      %902 = vst [vmem:[#allocation2 + $0x8] sm:$0xff] %v638
      %903 = vst [vmem:[#allocation2 + $0x10] sm:$0xff] %v643
      %904 = vst [vmem:[#allocation2 + $0x18] sm:$0xff] %v648
      %905 = vst [vmem:[#allocation2 + $0x20] sm:$0xff] %v653
      %906 = vst [vmem:[#allocation2 + $0x28] sm:$0xff] %v658
      %907 = vst [vmem:[#allocation2 + $0x30] sm:$0xff] %v663
      %908 = vst [vmem:[#allocation2 + $0x38] sm:$0xff] %v668
      %909 = vst [vmem:[#allocation2 + $0x40] sm:$0xff] %v673
      %910 = vst [vmem:[#allocation2 + $0x48] sm:$0xff] %v678
      %911 = vst [vmem:[#allocation2 + $0x50] sm:$0xff] %v683
      %912 = vst [vmem:[#allocation2 + $0x58] sm:$0xff] %v688
      %913 = vst [vmem:[#allocation2 + $0x60] sm:$0xff] %v693
      %914 = vst [vmem:[#allocation2 + $0x68] sm:$0xff] %v698
      %915 = vst [vmem:[#allocation2 + $0x70] sm:$0xff] %v703
      %916 = vst [vmem:[#allocation2 + $0x78] sm:$0xff] %v708
      %917 = vst [vmem:[#allocation2 + $0x80] sm:$0xff] %v713
      %918 = vst [vmem:[#allocation2 + $0x88] sm:$0xff] %v718
      %919 = vst [vmem:[#allocation2 + $0x90] sm:$0xff] %v723
      %920 = vst [vmem:[#allocation2 + $0x98] sm:$0xff] %v728
      %921 = vst [vmem:[#allocation2 + $0xa0] sm:$0xff] %v733
      %922 = vst [vmem:[#allocation2 + $0xa8] sm:$0xff] %v738
      %923 = vst [vmem:[#allocation2 + $0xb0] sm:$0xff] %v743
      %924 = vst [vmem:[#allocation2 + $0xb8] sm:$0xff] %v748
      %925 = vst [vmem:[#allocation2 + $0xc0] sm:$0xff] %v753
      %926 = vst [vmem:[#allocation2 + $0xc8] sm:$0xff] %v758
      %927 = vst [vmem:[#allocation2 + $0xd0] sm:$0xff] %v763
      %928 = vst [vmem:[#allocation2 + $0xd8] sm:$0xff] %v768
      %929 = vst [vmem:[#allocation2 + $0xe0] sm:$0xff] %v773
      %930 = vst [vmem:[#allocation2 + $0xe8] sm:$0xff] %v778
      %931 = vst [vmem:[#allocation2 + $0xf0] sm:$0xff] %v783
      %932 = vst [vmem:[#allocation2 + $0xf8] sm:$0xff] %v788
      %933 = vst [vmem:[#allocation2 + $0x100] sm:$0xff] %v793
      %934 = vst [vmem:[#allocation2 + $0x108] sm:$0xff] %v798
      %935 = vst [vmem:[#allocation2 + $0x110] sm:$0xff] %v803
      %936 = vst [vmem:[#allocation2 + $0x118] sm:$0xff] %v808
      %937 = vst [vmem:[#allocation2 + $0x120] sm:$0xff] %v813
      %938 = vst [vmem:[#allocation2 + $0x128] sm:$0xff] %v818
      %939 = vst [vmem:[#allocation2 + $0x130] sm:$0xff] %v823
      %940 = vst [vmem:[#allocation2 + $0x138] sm:$0xff] %v828
      %941 = vst [vmem:[#allocation2 + $0x140] sm:$0xff] %v833
      %942 = vst [vmem:[#allocation2 + $0x148] sm:$0xff] %v838
      %943 = vst [vmem:[#allocation2 + $0x150] sm:$0xff] %v843
      %944 = vst [vmem:[#allocation2 + $0x158] sm:$0xff] %v848
      %945 = vst [vmem:[#allocation2 + $0x160] sm:$0xff] %v853
      %946 = vst [vmem:[#allocation2 + $0x168] sm:$0xff] %v858
      %947 = vst [vmem:[#allocation2 + $0x170] sm:$0xff] %v863
      %948 = vst [vmem:[#allocation2 + $0x178] sm:$0xff] %v868
      %949 = vst [vmem:[#allocation2 + $0x180] sm:$0xff] %v873
      %950 = vst [vmem:[#allocation2 + $0x188] sm:$0xff] %v878
      %951 = vst [vmem:[#allocation2 + $0x190] sm:$0xff] %v883
      %952 = vst [vmem:[#allocation2 + $0x198] sm:$0xff] %v888
      %953 = vst [vmem:[#allocation2 + $0x1a0] sm:$0xff] %v893
      %954 = vst [vmem:[#allocation2 + $0x1a8] sm:$0xff] %v898
      %955 = vst [vmem:[#allocation2] sm:$0x1] 0.0
      %956 = vst [vmem:[#allocation2 + $0x18] sm:$0x1] 0.0
      %957 = vst [vmem:[#allocation2 + $0x30] sm:$0x1] 0.0
      %958 = vst [vmem:[#allocation2 + $0x48] sm:$0x1] 0.0
      %959 = vst [vmem:[#allocation2 + $0x60] sm:$0x1] 0.0
      %960 = vst [vmem:[#allocation2 + $0x78] sm:$0x1] 0.0
      %961 = vst [vmem:[#allocation2 + $0x90] sm:$0x1] 0.0
      %962 = vst [vmem:[#allocation2 + $0xa8] sm:$0x1] 0.0
      %963 = vst [vmem:[#allocation2 + $0xc0] sm:$0x1] 0.0
      %964 = vst [vmem:[#allocation2 + $0xd8] sm:$0x1] 0.0
      %965 = vst [vmem:[#allocation2 + $0xf0] sm:$0x1] 0.0
      %966 = vst [vmem:[#allocation2 + $0x108] sm:$0x1] 0.0
      %967 = vst [vmem:[#allocation2 + $0x120] sm:$0x1] 0.0
      %968 = vst [vmem:[#allocation2 + $0x138] sm:$0x1] 0.0
      %969 = vst [vmem:[#allocation2 + $0x150] sm:$0x1] 0.0
      %970 = vst [vmem:[#allocation2 + $0x168] sm:$0x1] 0.0
      %971 = vst [vmem:[#allocation2 + $0x180] sm:$0x1] 0.0
      %972 = vst [vmem:[#allocation2 + $0x198] sm:$0x1] 0.0
      %973 = vst [vmem:[#allocation2 + $0x11] sm:$0x1] 0.0
      %974 = vst [vmem:[#allocation2 + $0x29] sm:$0x1] 0.0
      %975 = vst [vmem:[#allocation2 + $0x41] sm:$0x1] 0.0
      %976 = vst [vmem:[#allocation2 + $0x59] sm:$0x1] 0.0
      %977 = vst [vmem:[#allocation2 + $0x71] sm:$0x1] 0.0
      %978 = vst [vmem:[#allocation2 + $0x89] sm:$0x1] 0.0
      %979 = vst [vmem:[#allocation2 + $0xa1] sm:$0x1] 0.0
      %980 = vst [vmem:[#allocation2 + $0xb9] sm:$0x1] 0.0
      %981 = vst [vmem:[#allocation2 + $0xd1] sm:$0x1] 0.0
      %982 = vst [vmem:[#allocation2 + $0xe9] sm:$0x1] 0.0
      %983 = vst [vmem:[#allocation2 + $0x101] sm:$0x1] 0.0
      %984 = vst [vmem:[#allocation2 + $0x119] sm:$0x1] 0.0
      %985 = vst [vmem:[#allocation2 + $0x131] sm:$0x1] 0.0
      %986 = vst [vmem:[#allocation2 + $0x149] sm:$0x1] 0.0
      %987 = vst [vmem:[#allocation2 + $0x161] sm:$0x1] 0.0
      %988 = vst [vmem:[#allocation2 + $0x179] sm:$0x1] 0.0
      %989 = vst [vmem:[#allocation2 + $0x191] sm:$0x1] 0.0
      %990 = vst [vmem:[#allocation2 + $0x1a9] sm:$0x1] 0.0
      %p991 = scmp.eq.s32.totalorder %s22, 0
      // Predicated region
      $region41: #{light_conv_forward.1} parent=39 // pred_check
        %p992 = pneg %p991
      $region42: #{light_conv_forward.1} parent=39 // pred_check_branch
        %994 = sbr.rel (%p992) target = $region44
      $region43: #{light_conv_forward.1} parent=39 // pred_region
        %995 = vst [vmem:[#allocation2] sm:$0xff] 0.0
        %996 = vst [vmem:[#allocation2 + $0x8] sm:$0xff] 0.0
        %997 = vst [vmem:[#allocation2 + $0x10] sm:$0xff] 0.0
        %s998 = scalar_lea.vmem [#allocation2], 408
        %999 = vst [vmem:[%s998] sm:$0xff] 0.0
        %1000 = vst [vmem:[%s998 + $0x8] sm:$0xff] 0.0
        %1001 = vst [vmem:[%s998 + $0x10] sm:$0xff] 0.0
      $region44: #{light_conv_forward.1} parent=39 // pred_fallthru
        _
      %v1002 = vld [vmem:[%s323] sm:$0x1]
      %v1003 = vld [vmem:[%s323 + $0x1] sm:$0x1]
      %v1004 = vld [vmem:[%s323 + $0x2] sm:$0x1]
      %v1005 = vld [vmem:[%s323 + $0x3] sm:$0x1]
      %v1006 = vld [vmem:[%s323 + $0x4] sm:$0x1]
      %v1007 = vld [vmem:[%s323 + $0x5] sm:$0x1]
      %v1008 = vld [vmem:[%s323 + $0x6] sm:$0x1]
      %v1009 = vld [vmem:[%s323 + $0x7] sm:$0x1]
      %v1010 = vld [vmem:[%s323 + $0x8] sm:$0x1]
      %v1011 = vld [vmem:[%s326] sm:$0x1]
      loop: start=0, step=1, limit=2
      $region45: #{light_conv_forward.1} parent=39 // loop_pre_header
        _
      $region46: #{light_conv_forward.1} parent=39 // loop_header
        %s1013 = sphi 0, %s1017
        %p1014 = scmp.ge.s32.totalorder %s1013, 2
      $region47: #{light_conv_forward.1} parent=39 // loop_header_branch
        %1016 = sbr.rel (%p1014) target = $region51
      $region48: #{light_conv_forward.1} parent=39 // loop_body
        %s1018 = smul.u32 %s1013, 8
        %s1019 = smul.u32 %s1018, 24
        %s1020 = scalar_lea.vmem [#allocation2], %s1019
        %v1021 = vld [vmem:[%s1020] sm:$0xff]
        %v1022 = vld [vmem:[%s1020 + $0x8] sm:$0xff]
        %v1023 = vld [vmem:[%s1020 + $0x18] sm:$0xff]
        %v1024 = vld [vmem:[%s1020 + $0x20] sm:$0xff]
        %v1025 = vld [vmem:[%s1020 + $0x30] sm:$0xff]
        %v1026 = vld [vmem:[%s1020 + $0x38] sm:$0xff]
        %v1027 = vld [vmem:[%s1020 + $0x48] sm:$0xff]
        %v1028 = vld [vmem:[%s1020 + $0x50] sm:$0xff]
        %v1029 = vld [vmem:[%s1020 + $0x60] sm:$0xff]
        %v1030 = vld [vmem:[%s1020 + $0x68] sm:$0xff]
        %v1031 = vld [vmem:[%s1020 + $0x78] sm:$0xff]
        %v1032 = vld [vmem:[%s1020 + $0x80] sm:$0xff]
        %v1033 = vld [vmem:[%s1020 + $0x90] sm:$0xff]
        %v1034 = vld [vmem:[%s1020 + $0x98] sm:$0xff]
        %v1035 = vld [vmem:[%s1020 + $0xa8] sm:$0xff]
        %v1036 = vld [vmem:[%s1020 + $0xb0] sm:$0xff]
        %v1037 = vlaneseq
        %v1038 = vshrl.u32 %v1037, 7
        %v1039 = vsub.s32 0, %v1038
        %v1040 = vrot.slane %v1002, %v1039
        %v1041 = vmul.f32 %v1021, %v1040
        %v1042 = vmul.f32 %v1022, %v1040
        %v1043 = vmul.f32 %v1023, %v1040
        %v1044 = vmul.f32 %v1024, %v1040
        %v1045 = vmul.f32 %v1025, %v1040
        %v1046 = vmul.f32 %v1026, %v1040
        %v1047 = vmul.f32 %v1027, %v1040
        %v1048 = vmul.f32 %v1028, %v1040
        %v1049 = vmul.f32 %v1029, %v1040
        %v1050 = vmul.f32 %v1030, %v1040
        %v1051 = vmul.f32 %v1031, %v1040
        %v1052 = vmul.f32 %v1032, %v1040
        %v1053 = vmul.f32 %v1033, %v1040
        %v1054 = vmul.f32 %v1034, %v1040
        %v1055 = vmul.f32 %v1035, %v1040
        %v1056 = vmul.f32 %v1036, %v1040
        %v1058 = vlaneseq
        %v1059 = vshrl.u32 %v1058, 7
        %v1060 = vsub.s32 0, %v1059
        %v1061 = vrot.slane %v1011, %v1060
        %v1063 = vadd.f32 %v1041, %v1061
        %v1064 = vadd.f32 %v1042, %v1061
        %v1065 = vadd.f32 %v1043, %v1061
        %v1066 = vadd.f32 %v1044, %v1061
        %v1067 = vadd.f32 %v1045, %v1061
        %v1068 = vadd.f32 %v1046, %v1061
        %v1069 = vadd.f32 %v1047, %v1061
        %v1070 = vadd.f32 %v1048, %v1061
        %v1071 = vadd.f32 %v1049, %v1061
        %v1072 = vadd.f32 %v1050, %v1061
        %v1073 = vadd.f32 %v1051, %v1061
        %v1074 = vadd.f32 %v1052, %v1061
        %v1075 = vadd.f32 %v1053, %v1061
        %v1076 = vadd.f32 %v1054, %v1061
        %v1077 = vadd.f32 %v1055, %v1061
        %v1078 = vadd.f32 %v1056, %v1061
        %v1079 = vld [vmem:[%s1020 + $0x1] sm:$0xff]
        %v1080 = vld [vmem:[%s1020 + $0x9] sm:$0xff]
        %v1081 = vld [vmem:[%s1020 + $0x19] sm:$0xff]
        %v1082 = vld [vmem:[%s1020 + $0x21] sm:$0xff]
        %v1083 = vld [vmem:[%s1020 + $0x31] sm:$0xff]
        %v1084 = vld [vmem:[%s1020 + $0x39] sm:$0xff]
        %v1085 = vld [vmem:[%s1020 + $0x49] sm:$0xff]
        %v1086 = vld [vmem:[%s1020 + $0x51] sm:$0xff]
        %v1087 = vld [vmem:[%s1020 + $0x61] sm:$0xff]
        %v1088 = vld [vmem:[%s1020 + $0x69] sm:$0xff]
        %v1089 = vld [vmem:[%s1020 + $0x79] sm:$0xff]
        %v1090 = vld [vmem:[%s1020 + $0x81] sm:$0xff]
        %v1091 = vld [vmem:[%s1020 + $0x91] sm:$0xff]
        %v1092 = vld [vmem:[%s1020 + $0x99] sm:$0xff]
        %v1093 = vld [vmem:[%s1020 + $0xa9] sm:$0xff]
        %v1094 = vld [vmem:[%s1020 + $0xb1] sm:$0xff]
        %v1095 = vlaneseq
        %v1096 = vshrl.u32 %v1095, 7
        %v1097 = vsub.s32 0, %v1096
        %v1098 = vrot.slane %v1003, %v1097
        %v1099 = vmul.f32 %v1079, %v1098
        %v1100 = vmul.f32 %v1080, %v1098
        %v1101 = vmul.f32 %v1081, %v1098
        %v1102 = vmul.f32 %v1082, %v1098
        %v1103 = vmul.f32 %v1083, %v1098
        %v1104 = vmul.f32 %v1084, %v1098
        %v1105 = vmul.f32 %v1085, %v1098
        %v1106 = vmul.f32 %v1086, %v1098
        %v1107 = vmul.f32 %v1087, %v1098
        %v1108 = vmul.f32 %v1088, %v1098
        %v1109 = vmul.f32 %v1089, %v1098
        %v1110 = vmul.f32 %v1090, %v1098
        %v1111 = vmul.f32 %v1091, %v1098
        %v1112 = vmul.f32 %v1092, %v1098
        %v1113 = vmul.f32 %v1093, %v1098
        %v1114 = vmul.f32 %v1094, %v1098
        %v1115 = vadd.f32 %v1063, %v1099
        %v1116 = vadd.f32 %v1064, %v1100
        %v1117 = vadd.f32 %v1065, %v1101
        %v1118 = vadd.f32 %v1066, %v1102
        %v1119 = vadd.f32 %v1067, %v1103
        %v1120 = vadd.f32 %v1068, %v1104
        %v1121 = vadd.f32 %v1069, %v1105
        %v1122 = vadd.f32 %v1070, %v1106
        %v1123 = vadd.f32 %v1071, %v1107
        %v1124 = vadd.f32 %v1072, %v1108
        %v1125 = vadd.f32 %v1073, %v1109
        %v1126 = vadd.f32 %v1074, %v1110
        %v1127 = vadd.f32 %v1075, %v1111
        %v1128 = vadd.f32 %v1076, %v1112
        %v1129 = vadd.f32 %v1077, %v1113
        %v1130 = vadd.f32 %v1078, %v1114
        %v1131 = vld [vmem:[%s1020 + $0x2] sm:$0xff]
        %v1132 = vld [vmem:[%s1020 + $0xa] sm:$0xff]
        %v1133 = vld [vmem:[%s1020 + $0x1a] sm:$0xff]
        %v1134 = vld [vmem:[%s1020 + $0x22] sm:$0xff]
        %v1135 = vld [vmem:[%s1020 + $0x32] sm:$0xff]
        %v1136 = vld [vmem:[%s1020 + $0x3a] sm:$0xff]
        %v1137 = vld [vmem:[%s1020 + $0x4a] sm:$0xff]
        %v1138 = vld [vmem:[%s1020 + $0x52] sm:$0xff]
        %v1139 = vld [vmem:[%s1020 + $0x62] sm:$0xff]
        %v1140 = vld [vmem:[%s1020 + $0x6a] sm:$0xff]
        %v1141 = vld [vmem:[%s1020 + $0x7a] sm:$0xff]
        %v1142 = vld [vmem:[%s1020 + $0x82] sm:$0xff]
        %v1143 = vld [vmem:[%s1020 + $0x92] sm:$0xff]
        %v1144 = vld [vmem:[%s1020 + $0x9a] sm:$0xff]
        %v1145 = vld [vmem:[%s1020 + $0xaa] sm:$0xff]
        %v1146 = vld [vmem:[%s1020 + $0xb2] sm:$0xff]
        %v1147 = vlaneseq
        %v1148 = vshrl.u32 %v1147, 7
        %v1149 = vsub.s32 0, %v1148
        %v1150 = vrot.slane %v1004, %v1149
        %v1151 = vmul.f32 %v1131, %v1150
        %v1152 = vmul.f32 %v1132, %v1150
        %v1153 = vmul.f32 %v1133, %v1150
        %v1154 = vmul.f32 %v1134, %v1150
        %v1155 = vmul.f32 %v1135, %v1150
        %v1156 = vmul.f32 %v1136, %v1150
        %v1157 = vmul.f32 %v1137, %v1150
        %v1158 = vmul.f32 %v1138, %v1150
        %v1159 = vmul.f32 %v1139, %v1150
        %v1160 = vmul.f32 %v1140, %v1150
        %v1161 = vmul.f32 %v1141, %v1150
        %v1162 = vmul.f32 %v1142, %v1150
        %v1163 = vmul.f32 %v1143, %v1150
        %v1164 = vmul.f32 %v1144, %v1150
        %v1165 = vmul.f32 %v1145, %v1150
        %v1166 = vmul.f32 %v1146, %v1150
        %v1167 = vadd.f32 %v1115, %v1151
        %v1168 = vadd.f32 %v1116, %v1152
        %v1169 = vadd.f32 %v1117, %v1153
        %v1170 = vadd.f32 %v1118, %v1154
        %v1171 = vadd.f32 %v1119, %v1155
        %v1172 = vadd.f32 %v1120, %v1156
        %v1173 = vadd.f32 %v1121, %v1157
        %v1174 = vadd.f32 %v1122, %v1158
        %v1175 = vadd.f32 %v1123, %v1159
        %v1176 = vadd.f32 %v1124, %v1160
        %v1177 = vadd.f32 %v1125, %v1161
        %v1178 = vadd.f32 %v1126, %v1162
        %v1179 = vadd.f32 %v1127, %v1163
        %v1180 = vadd.f32 %v1128, %v1164
        %v1181 = vadd.f32 %v1129, %v1165
        %v1182 = vadd.f32 %v1130, %v1166
        %s1183 = sadd.s32 %s1018, 1
        %s1184 = smul.u32 %s1183, 24
        %s1185 = scalar_lea.vmem [#allocation2], %s1184
        %v1186 = vld [vmem:[%s1185] sm:$0xff]
        %v1187 = vld [vmem:[%s1185 + $0x8] sm:$0xff]
        %v1188 = vld [vmem:[%s1185 + $0x18] sm:$0xff]
        %v1189 = vld [vmem:[%s1185 + $0x20] sm:$0xff]
        %v1190 = vld [vmem:[%s1185 + $0x30] sm:$0xff]
        %v1191 = vld [vmem:[%s1185 + $0x38] sm:$0xff]
        %v1192 = vld [vmem:[%s1185 + $0x48] sm:$0xff]
        %v1193 = vld [vmem:[%s1185 + $0x50] sm:$0xff]
        %v1194 = vld [vmem:[%s1185 + $0x60] sm:$0xff]
        %v1195 = vld [vmem:[%s1185 + $0x68] sm:$0xff]
        %v1196 = vld [vmem:[%s1185 + $0x78] sm:$0xff]
        %v1197 = vld [vmem:[%s1185 + $0x80] sm:$0xff]
        %v1198 = vld [vmem:[%s1185 + $0x90] sm:$0xff]
        %v1199 = vld [vmem:[%s1185 + $0x98] sm:$0xff]
        %v1200 = vld [vmem:[%s1185 + $0xa8] sm:$0xff]
        %v1201 = vld [vmem:[%s1185 + $0xb0] sm:$0xff]
        %v1202 = vlaneseq
        %v1203 = vshrl.u32 %v1202, 7
        %v1204 = vsub.s32 0, %v1203
        %v1205 = vrot.slane %v1005, %v1204
        %v1206 = vmul.f32 %v1186, %v1205
        %v1207 = vmul.f32 %v1187, %v1205
        %v1208 = vmul.f32 %v1188, %v1205
        %v1209 = vmul.f32 %v1189, %v1205
        %v1210 = vmul.f32 %v1190, %v1205
        %v1211 = vmul.f32 %v1191, %v1205
        %v1212 = vmul.f32 %v1192, %v1205
        %v1213 = vmul.f32 %v1193, %v1205
        %v1214 = vmul.f32 %v1194, %v1205
        %v1215 = vmul.f32 %v1195, %v1205
        %v1216 = vmul.f32 %v1196, %v1205
        %v1217 = vmul.f32 %v1197, %v1205
        %v1218 = vmul.f32 %v1198, %v1205
        %v1219 = vmul.f32 %v1199, %v1205
        %v1220 = vmul.f32 %v1200, %v1205
        %v1221 = vmul.f32 %v1201, %v1205
        %v1222 = vadd.f32 %v1167, %v1206
        %v1223 = vadd.f32 %v1168, %v1207
        %v1224 = vadd.f32 %v1169, %v1208
        %v1225 = vadd.f32 %v1170, %v1209
        %v1226 = vadd.f32 %v1171, %v1210
        %v1227 = vadd.f32 %v1172, %v1211
        %v1228 = vadd.f32 %v1173, %v1212
        %v1229 = vadd.f32 %v1174, %v1213
        %v1230 = vadd.f32 %v1175, %v1214
        %v1231 = vadd.f32 %v1176, %v1215
        %v1232 = vadd.f32 %v1177, %v1216
        %v1233 = vadd.f32 %v1178, %v1217
        %v1234 = vadd.f32 %v1179, %v1218
        %v1235 = vadd.f32 %v1180, %v1219
        %v1236 = vadd.f32 %v1181, %v1220
        %v1237 = vadd.f32 %v1182, %v1221
        %v1238 = vld [vmem:[%s1185 + $0x1] sm:$0xff]
        %v1239 = vld [vmem:[%s1185 + $0x9] sm:$0xff]
        %v1240 = vld [vmem:[%s1185 + $0x19] sm:$0xff]
        %v1241 = vld [vmem:[%s1185 + $0x21] sm:$0xff]
        %v1242 = vld [vmem:[%s1185 + $0x31] sm:$0xff]
        %v1243 = vld [vmem:[%s1185 + $0x39] sm:$0xff]
        %v1244 = vld [vmem:[%s1185 + $0x49] sm:$0xff]
        %v1245 = vld [vmem:[%s1185 + $0x51] sm:$0xff]
        %v1246 = vld [vmem:[%s1185 + $0x61] sm:$0xff]
        %v1247 = vld [vmem:[%s1185 + $0x69] sm:$0xff]
        %v1248 = vld [vmem:[%s1185 + $0x79] sm:$0xff]
        %v1249 = vld [vmem:[%s1185 + $0x81] sm:$0xff]
        %v1250 = vld [vmem:[%s1185 + $0x91] sm:$0xff]
        %v1251 = vld [vmem:[%s1185 + $0x99] sm:$0xff]
        %v1252 = vld [vmem:[%s1185 + $0xa9] sm:$0xff]
        %v1253 = vld [vmem:[%s1185 + $0xb1] sm:$0xff]
        %v1254 = vlaneseq
        %v1255 = vshrl.u32 %v1254, 7
        %v1256 = vsub.s32 0, %v1255
        %v1257 = vrot.slane %v1006, %v1256
        %v1258 = vmul.f32 %v1238, %v1257
        %v1259 = vmul.f32 %v1239, %v1257
        %v1260 = vmul.f32 %v1240, %v1257
        %v1261 = vmul.f32 %v1241, %v1257
        %v1262 = vmul.f32 %v1242, %v1257
        %v1263 = vmul.f32 %v1243, %v1257
        %v1264 = vmul.f32 %v1244, %v1257
        %v1265 = vmul.f32 %v1245, %v1257
        %v1266 = vmul.f32 %v1246, %v1257
        %v1267 = vmul.f32 %v1247, %v1257
        %v1268 = vmul.f32 %v1248, %v1257
        %v1269 = vmul.f32 %v1249, %v1257
        %v1270 = vmul.f32 %v1250, %v1257
        %v1271 = vmul.f32 %v1251, %v1257
        %v1272 = vmul.f32 %v1252, %v1257
        %v1273 = vmul.f32 %v1253, %v1257
        %v1274 = vadd.f32 %v1222, %v1258
        %v1275 = vadd.f32 %v1223, %v1259
        %v1276 = vadd.f32 %v1224, %v1260
        %v1277 = vadd.f32 %v1225, %v1261
        %v1278 = vadd.f32 %v1226, %v1262
        %v1279 = vadd.f32 %v1227, %v1263
        %v1280 = vadd.f32 %v1228, %v1264
        %v1281 = vadd.f32 %v1229, %v1265
        %v1282 = vadd.f32 %v1230, %v1266
        %v1283 = vadd.f32 %v1231, %v1267
        %v1284 = vadd.f32 %v1232, %v1268
        %v1285 = vadd.f32 %v1233, %v1269
        %v1286 = vadd.f32 %v1234, %v1270
        %v1287 = vadd.f32 %v1235, %v1271
        %v1288 = vadd.f32 %v1236, %v1272
        %v1289 = vadd.f32 %v1237, %v1273
        %v1290 = vld [vmem:[%s1185 + $0x2] sm:$0xff]
        %v1291 = vld [vmem:[%s1185 + $0xa] sm:$0xff]
        %v1292 = vld [vmem:[%s1185 + $0x1a] sm:$0xff]
        %v1293 = vld [vmem:[%s1185 + $0x22] sm:$0xff]
        %v1294 = vld [vmem:[%s1185 + $0x32] sm:$0xff]
        %v1295 = vld [vmem:[%s1185 + $0x3a] sm:$0xff]
        %v1296 = vld [vmem:[%s1185 + $0x4a] sm:$0xff]
        %v1297 = vld [vmem:[%s1185 + $0x52] sm:$0xff]
        %v1298 = vld [vmem:[%s1185 + $0x62] sm:$0xff]
        %v1299 = vld [vmem:[%s1185 + $0x6a] sm:$0xff]
        %v1300 = vld [vmem:[%s1185 + $0x7a] sm:$0xff]
        %v1301 = vld [vmem:[%s1185 + $0x82] sm:$0xff]
        %v1302 = vld [vmem:[%s1185 + $0x92] sm:$0xff]
        %v1303 = vld [vmem:[%s1185 + $0x9a] sm:$0xff]
        %v1304 = vld [vmem:[%s1185 + $0xaa] sm:$0xff]
        %v1305 = vld [vmem:[%s1185 + $0xb2] sm:$0xff]
        %v1306 = vlaneseq
        %v1307 = vshrl.u32 %v1306, 7
        %v1308 = vsub.s32 0, %v1307
        %v1309 = vrot.slane %v1007, %v1308
        %v1310 = vmul.f32 %v1290, %v1309
        %v1311 = vmul.f32 %v1291, %v1309
        %v1312 = vmul.f32 %v1292, %v1309
        %v1313 = vmul.f32 %v1293, %v1309
        %v1314 = vmul.f32 %v1294, %v1309
        %v1315 = vmul.f32 %v1295, %v1309
        %v1316 = vmul.f32 %v1296, %v1309
        %v1317 = vmul.f32 %v1297, %v1309
        %v1318 = vmul.f32 %v1298, %v1309
        %v1319 = vmul.f32 %v1299, %v1309
        %v1320 = vmul.f32 %v1300, %v1309
        %v1321 = vmul.f32 %v1301, %v1309
        %v1322 = vmul.f32 %v1302, %v1309
        %v1323 = vmul.f32 %v1303, %v1309
        %v1324 = vmul.f32 %v1304, %v1309
        %v1325 = vmul.f32 %v1305, %v1309
        %v1326 = vadd.f32 %v1274, %v1310
        %v1327 = vadd.f32 %v1275, %v1311
        %v1328 = vadd.f32 %v1276, %v1312
        %v1329 = vadd.f32 %v1277, %v1313
        %v1330 = vadd.f32 %v1278, %v1314
        %v1331 = vadd.f32 %v1279, %v1315
        %v1332 = vadd.f32 %v1280, %v1316
        %v1333 = vadd.f32 %v1281, %v1317
        %v1334 = vadd.f32 %v1282, %v1318
        %v1335 = vadd.f32 %v1283, %v1319
        %v1336 = vadd.f32 %v1284, %v1320
        %v1337 = vadd.f32 %v1285, %v1321
        %v1338 = vadd.f32 %v1286, %v1322
        %v1339 = vadd.f32 %v1287, %v1323
        %v1340 = vadd.f32 %v1288, %v1324
        %v1341 = vadd.f32 %v1289, %v1325
        %s1342 = sadd.s32 %s1018, 2
        %s1343 = smul.u32 %s1342, 24
        %s1344 = scalar_lea.vmem [#allocation2], %s1343
        %v1345 = vld [vmem:[%s1344] sm:$0xff]
        %v1346 = vld [vmem:[%s1344 + $0x8] sm:$0xff]
        %v1347 = vld [vmem:[%s1344 + $0x18] sm:$0xff]
        %v1348 = vld [vmem:[%s1344 + $0x20] sm:$0xff]
        %v1349 = vld [vmem:[%s1344 + $0x30] sm:$0xff]
        %v1350 = vld [vmem:[%s1344 + $0x38] sm:$0xff]
        %v1351 = vld [vmem:[%s1344 + $0x48] sm:$0xff]
        %v1352 = vld [vmem:[%s1344 + $0x50] sm:$0xff]
        %v1353 = vld [vmem:[%s1344 + $0x60] sm:$0xff]
        %v1354 = vld [vmem:[%s1344 + $0x68] sm:$0xff]
        %v1355 = vld [vmem:[%s1344 + $0x78] sm:$0xff]
        %v1356 = vld [vmem:[%s1344 + $0x80] sm:$0xff]
        %v1357 = vld [vmem:[%s1344 + $0x90] sm:$0xff]
        %v1358 = vld [vmem:[%s1344 + $0x98] sm:$0xff]
        %v1359 = vld [vmem:[%s1344 + $0xa8] sm:$0xff]
        %v1360 = vld [vmem:[%s1344 + $0xb0] sm:$0xff]
        %v1361 = vlaneseq
        %v1362 = vshrl.u32 %v1361, 7
        %v1363 = vsub.s32 0, %v1362
        %v1364 = vrot.slane %v1008, %v1363
        %v1365 = vmul.f32 %v1345, %v1364
        %v1366 = vmul.f32 %v1346, %v1364
        %v1367 = vmul.f32 %v1347, %v1364
        %v1368 = vmul.f32 %v1348, %v1364
        %v1369 = vmul.f32 %v1349, %v1364
        %v1370 = vmul.f32 %v1350, %v1364
        %v1371 = vmul.f32 %v1351, %v1364
        %v1372 = vmul.f32 %v1352, %v1364
        %v1373 = vmul.f32 %v1353, %v1364
        %v1374 = vmul.f32 %v1354, %v1364
        %v1375 = vmul.f32 %v1355, %v1364
        %v1376 = vmul.f32 %v1356, %v1364
        %v1377 = vmul.f32 %v1357, %v1364
        %v1378 = vmul.f32 %v1358, %v1364
        %v1379 = vmul.f32 %v1359, %v1364
        %v1380 = vmul.f32 %v1360, %v1364
        %v1381 = vadd.f32 %v1326, %v1365
        %v1382 = vadd.f32 %v1327, %v1366
        %v1383 = vadd.f32 %v1328, %v1367
        %v1384 = vadd.f32 %v1329, %v1368
        %v1385 = vadd.f32 %v1330, %v1369
        %v1386 = vadd.f32 %v1331, %v1370
        %v1387 = vadd.f32 %v1332, %v1371
        %v1388 = vadd.f32 %v1333, %v1372
        %v1389 = vadd.f32 %v1334, %v1373
        %v1390 = vadd.f32 %v1335, %v1374
        %v1391 = vadd.f32 %v1336, %v1375
        %v1392 = vadd.f32 %v1337, %v1376
        %v1393 = vadd.f32 %v1338, %v1377
        %v1394 = vadd.f32 %v1339, %v1378
        %v1395 = vadd.f32 %v1340, %v1379
        %v1396 = vadd.f32 %v1341, %v1380
        %v1397 = vld [vmem:[%s1344 + $0x1] sm:$0xff]
        %v1398 = vld [vmem:[%s1344 + $0x9] sm:$0xff]
        %v1399 = vld [vmem:[%s1344 + $0x19] sm:$0xff]
        %v1400 = vld [vmem:[%s1344 + $0x21] sm:$0xff]
        %v1401 = vld [vmem:[%s1344 + $0x31] sm:$0xff]
        %v1402 = vld [vmem:[%s1344 + $0x39] sm:$0xff]
        %v1403 = vld [vmem:[%s1344 + $0x49] sm:$0xff]
        %v1404 = vld [vmem:[%s1344 + $0x51] sm:$0xff]
        %v1405 = vld [vmem:[%s1344 + $0x61] sm:$0xff]
        %v1406 = vld [vmem:[%s1344 + $0x69] sm:$0xff]
        %v1407 = vld [vmem:[%s1344 + $0x79] sm:$0xff]
        %v1408 = vld [vmem:[%s1344 + $0x81] sm:$0xff]
        %v1409 = vld [vmem:[%s1344 + $0x91] sm:$0xff]
        %v1410 = vld [vmem:[%s1344 + $0x99] sm:$0xff]
        %v1411 = vld [vmem:[%s1344 + $0xa9] sm:$0xff]
        %v1412 = vld [vmem:[%s1344 + $0xb1] sm:$0xff]
        %v1413 = vlaneseq
        %v1414 = vshrl.u32 %v1413, 7
        %v1415 = vsub.s32 0, %v1414
        %v1416 = vrot.slane %v1009, %v1415
        %v1417 = vmul.f32 %v1397, %v1416
        %v1418 = vmul.f32 %v1398, %v1416
        %v1419 = vmul.f32 %v1399, %v1416
        %v1420 = vmul.f32 %v1400, %v1416
        %v1421 = vmul.f32 %v1401, %v1416
        %v1422 = vmul.f32 %v1402, %v1416
        %v1423 = vmul.f32 %v1403, %v1416
        %v1424 = vmul.f32 %v1404, %v1416
        %v1425 = vmul.f32 %v1405, %v1416
        %v1426 = vmul.f32 %v1406, %v1416
        %v1427 = vmul.f32 %v1407, %v1416
        %v1428 = vmul.f32 %v1408, %v1416
        %v1429 = vmul.f32 %v1409, %v1416
        %v1430 = vmul.f32 %v1410, %v1416
        %v1431 = vmul.f32 %v1411, %v1416
        %v1432 = vmul.f32 %v1412, %v1416
        %v1433 = vadd.f32 %v1381, %v1417
        %v1434 = vadd.f32 %v1382, %v1418
        %v1435 = vadd.f32 %v1383, %v1419
        %v1436 = vadd.f32 %v1384, %v1420
        %v1437 = vadd.f32 %v1385, %v1421
        %v1438 = vadd.f32 %v1386, %v1422
        %v1439 = vadd.f32 %v1387, %v1423
        %v1440 = vadd.f32 %v1388, %v1424
        %v1441 = vadd.f32 %v1389, %v1425
        %v1442 = vadd.f32 %v1390, %v1426
        %v1443 = vadd.f32 %v1391, %v1427
        %v1444 = vadd.f32 %v1392, %v1428
        %v1445 = vadd.f32 %v1393, %v1429
        %v1446 = vadd.f32 %v1394, %v1430
        %v1447 = vadd.f32 %v1395, %v1431
        %v1448 = vadd.f32 %v1396, %v1432
        %v1449 = vld [vmem:[%s1344 + $0x2] sm:$0xff]
        %v1450 = vld [vmem:[%s1344 + $0xa] sm:$0xff]
        %v1451 = vld [vmem:[%s1344 + $0x1a] sm:$0xff]
        %v1452 = vld [vmem:[%s1344 + $0x22] sm:$0xff]
        %v1453 = vld [vmem:[%s1344 + $0x32] sm:$0xff]
        %v1454 = vld [vmem:[%s1344 + $0x3a] sm:$0xff]
        %v1455 = vld [vmem:[%s1344 + $0x4a] sm:$0xff]
        %v1456 = vld [vmem:[%s1344 + $0x52] sm:$0xff]
        %v1457 = vld [vmem:[%s1344 + $0x62] sm:$0xff]
        %v1458 = vld [vmem:[%s1344 + $0x6a] sm:$0xff]
        %v1459 = vld [vmem:[%s1344 + $0x7a] sm:$0xff]
        %v1460 = vld [vmem:[%s1344 + $0x82] sm:$0xff]
        %v1461 = vld [vmem:[%s1344 + $0x92] sm:$0xff]
        %v1462 = vld [vmem:[%s1344 + $0x9a] sm:$0xff]
        %v1463 = vld [vmem:[%s1344 + $0xaa] sm:$0xff]
        %v1464 = vld [vmem:[%s1344 + $0xb2] sm:$0xff]
        %v1465 = vlaneseq
        %v1466 = vshrl.u32 %v1465, 7
        %v1467 = vsub.s32 0, %v1466
        %v1468 = vrot.slane %v1010, %v1467
        %v1469 = vmul.f32 %v1449, %v1468
        %v1470 = vmul.f32 %v1450, %v1468
        %v1471 = vmul.f32 %v1451, %v1468
        %v1472 = vmul.f32 %v1452, %v1468
        %v1473 = vmul.f32 %v1453, %v1468
        %v1474 = vmul.f32 %v1454, %v1468
        %v1475 = vmul.f32 %v1455, %v1468
        %v1476 = vmul.f32 %v1456, %v1468
        %v1477 = vmul.f32 %v1457, %v1468
        %v1478 = vmul.f32 %v1458, %v1468
        %v1479 = vmul.f32 %v1459, %v1468
        %v1480 = vmul.f32 %v1460, %v1468
        %v1481 = vmul.f32 %v1461, %v1468
        %v1482 = vmul.f32 %v1462, %v1468
        %v1483 = vmul.f32 %v1463, %v1468
        %v1484 = vmul.f32 %v1464, %v1468
        %v1485 = vadd.f32 %v1433, %v1469
        %v1486 = vadd.f32 %v1434, %v1470
        %v1487 = vadd.f32 %v1435, %v1471
        %v1488 = vadd.f32 %v1436, %v1472
        %v1489 = vadd.f32 %v1437, %v1473
        %v1490 = vadd.f32 %v1438, %v1474
        %v1491 = vadd.f32 %v1439, %v1475
        %v1492 = vadd.f32 %v1440, %v1476
        %v1493 = vadd.f32 %v1441, %v1477
        %v1494 = vadd.f32 %v1442, %v1478
        %v1495 = vadd.f32 %v1443, %v1479
        %v1496 = vadd.f32 %v1444, %v1480
        %v1497 = vadd.f32 %v1445, %v1481
        %v1498 = vadd.f32 %v1446, %v1482
        %v1499 = vadd.f32 %v1447, %v1483
        %v1500 = vadd.f32 %v1448, %v1484
        %v1501 = vmax.f32 %v1485, 0.0
        %v1502 = vmax.f32 %v1486, 0.0
        %v1503 = vmax.f32 %v1487, 0.0
        %v1504 = vmax.f32 %v1488, 0.0
        %v1505 = vmax.f32 %v1489, 0.0
        %v1506 = vmax.f32 %v1490, 0.0
        %v1507 = vmax.f32 %v1491, 0.0
        %v1508 = vmax.f32 %v1492, 0.0
        %v1509 = vmax.f32 %v1493, 0.0
        %v1510 = vmax.f32 %v1494, 0.0
        %v1511 = vmax.f32 %v1495, 0.0
        %v1512 = vmax.f32 %v1496, 0.0
        %v1513 = vmax.f32 %v1497, 0.0
        %v1514 = vmax.f32 %v1498, 0.0
        %v1515 = vmax.f32 %v1499, 0.0
        %v1516 = vmax.f32 %v1500, 0.0
        %s1517 = smul.u32 %s1018, 16
        %s1518 = scalar_lea.vmem %s339, %s1517
        %1519 = vst [vmem:[%s1518] sm:$0xff] %v1501
        %1520 = vst [vmem:[%s1518 + $0x8] sm:$0xff] %v1502
        %1521 = vst [vmem:[%s1518 + $0x10] sm:$0xff] %v1503
        %1522 = vst [vmem:[%s1518 + $0x18] sm:$0xff] %v1504
        %1523 = vst [vmem:[%s1518 + $0x20] sm:$0xff] %v1505
        %1524 = vst [vmem:[%s1518 + $0x28] sm:$0xff] %v1506
        %1525 = vst [vmem:[%s1518 + $0x30] sm:$0xff] %v1507
        %1526 = vst [vmem:[%s1518 + $0x38] sm:$0xff] %v1508
        %1527 = vst [vmem:[%s1518 + $0x40] sm:$0xff] %v1509
        %1528 = vst [vmem:[%s1518 + $0x48] sm:$0xff] %v1510
        %1529 = vst [vmem:[%s1518 + $0x50] sm:$0xff] %v1511
        %1530 = vst [vmem:[%s1518 + $0x58] sm:$0xff] %v1512
        %1531 = vst [vmem:[%s1518 + $0x60] sm:$0xff] %v1513
        %1532 = vst [vmem:[%s1518 + $0x68] sm:$0xff] %v1514
        %1533 = vst [vmem:[%s1518 + $0x70] sm:$0xff] %v1515
        %1534 = vst [vmem:[%s1518 + $0x78] sm:$0xff] %v1516
      $region49: #{light_conv_forward.1} parent=39 // loop_footer
        %s1017 = sadd.s32 1, %s1013
      $region50: #{light_conv_forward.1} parent=39 // loop_footer_branch
        %1012 = sbr.rel target = $region46
      $region51: #{light_conv_forward.1} parent=39 // loop_exit
        _
      %s1535 = smul.u32 16, %s22
      %p1536 = scmp.lt.s32.totalorder %s21, 1
      %s1537 = scalar_select %p1536, %s21, 1
      %p1538 = scmp.lt.s32.totalorder %s1535, 15
      %s1539 = scalar_select %p1538, %s1535, 15
      %p1540 = scmp.lt.s32.totalorder %s23, 0
      %s1541 = scalar_select %p1540, %s23, 0
      %s1542 = smul.addr %s1539, 2
      %s1543 = sadd.s32 %s1541, %s1542
      %s1544 = smul.addr %s1537, 32
      %s1545 = sadd.s32 %s1543, %s1544
      %s1546 = smul.addr %s1545, 8
      %s1547 = scalar_lea.vmem %s5, %s1546
      // Predicated region
      $region52: #{light_conv_forward.1} parent=39 // pred_check
        %p1548 = pneg %p189
      $region53: #{light_conv_forward.1} parent=39 // pred_check_branch
        %1550 = sbr.rel (%p1548) target = $region55
      $region54: #{light_conv_forward.1} parent=39 // pred_region
        %s1551 = smul.u32 16, %s22
      $region55: #{light_conv_forward.1} parent=39 // pred_fallthru
        _
    $region40: #{light_conv_forward.1} parent=5 // pred_fallthru
      _
    %p1552 = scmp.le.s32.totalorder 2, %s11
    // Predicated region
    $region56: #{light_conv_forward.1} parent=5 // pred_check
      %p1553 = pneg %p1552
    $region57: #{light_conv_forward.1} parent=5 // pred_check_branch
      %1555 = sbr.rel (%p1553) target = $region59
    $region58: #{light_conv_forward.1} parent=5 // pred_region
      %s1556 = ssub.s32 %s11, 2
      // Predicated region
      $region60: #{light_conv_forward.1} parent=58 // pred_check
        %p1557 = pneg %p195
      $region61: #{light_conv_forward.1} parent=58 // pred_check_branch
        %1559 = sbr.rel (%p1557) target = $region63
      $region62: #{light_conv_forward.1} parent=58 // pred_region
        %s1560 = smul.u32 16, %s25
        %p1561 = scmp.lt.s32.totalorder %s24, 1
        %s1562 = scalar_select %p1561, %s24, 1
        %p1563 = scmp.lt.s32.totalorder %s1560, 15
        %s1564 = scalar_select %p1563, %s1560, 15
        %p1565 = scmp.lt.s32.totalorder %s26, 0
        %s1566 = scalar_select %p1565, %s26, 0
        %s1567 = smul.addr %s1564, 2
        %s1568 = sadd.s32 %s1566, %s1567
        %s1569 = smul.addr %s1562, 32
        %s1570 = sadd.s32 %s1568, %s1569
        %s1571 = smul.addr %s1570, 8
        %s1572 = scalar_lea.vmem %s5, %s1571
      $region63: #{light_conv_forward.1} parent=58 // pred_fallthru
        _
    $region59: #{light_conv_forward.1} parent=5 // pred_fallthru
      _
  $region6: #{light_conv_forward.1} parent=0 // loop_footer
    %s15 = sadd.s32 1, %s11
  $region7: #{light_conv_forward.1} parent=0 // loop_footer_branch
    %10 = sbr.rel target = $region3
  $region8: #{light_conv_forward.1} parent=0 // loop_exit
    _

</llo_original>
